<compile_context>
chip_gen: v6e
topology: v6e:2x2x1
jax: 0.10.0
libtpu: 0.0.40
codegen_flags: <defaults>
</compile_context>

<pallas_src>
import math
from functools import partial

import jax
import jax.numpy as jnp
from jax.experimental import pallas as pl
from jax.experimental.pallas import tpu as pltpu


# ----------------------------------------------------------------------------
# helpers
# ----------------------------------------------------------------------------
def _pick_tile(dim, target, align):
    """Largest multiple of `align` that divides `dim` and is <= target (or full dim)."""
    if dim <= target:
        return dim
    t = (target // align) * align
    while t >= align:
        if dim % t == 0:
            return t
        t -= align
    return dim


def _vmem_capacity_bytes():
    try:
        return int(pltpu.get_tpu_info().vmem_capacity_bytes)
    except Exception:
        return 64 * 1024 * 1024          # conservative (v7x per-TC VMEM)


_VMEM_CAP = _vmem_capacity_bytes()


def _cparams(sems, vmem_need=0):
    """CompilerParams with an explicit scoped-VMEM limit (>= default, <= 90% of HW)."""
    limit = int(min(max(2 * int(vmem_need), 32 * 1024 * 1024), int(0.9 * _VMEM_CAP)))
    return pltpu.CompilerParams(dimension_semantics=sems, vmem_limit_bytes=limit)


# ----------------------------------------------------------------------------
# Tiled linear: y = relu?(x @ w + b), bf16 MXU operands, f32 VMEM accumulator
# ----------------------------------------------------------------------------
def _matmul_kernel(x_ref, w_ref, b_ref, o_ref, acc_ref, *, relu, n_k):
    @pl.when(pl.program_id(2) == 0)
    def _():
        acc_ref[...] = jnp.zeros_like(acc_ref)

    acc_ref[...] += jnp.dot(
        x_ref[...].astype(jnp.bfloat16),
        w_ref[...].astype(jnp.bfloat16),
        preferred_element_type=jnp.float32,
    )

    @pl.when(pl.program_id(2) == n_k - 1)
    def _():
        y = acc_ref[...] + b_ref[...]
        if relu:
            y = jnp.maximum(y, 0.0)
        o_ref[...] = y.astype(o_ref.dtype)


def linear(x, w, b, relu=False, out_dtype=jnp.bfloat16, tm=512, tn=512, tk=512):
    """x: (M, K), w: (K, N), b: (N,) -> (M, N) in out_dtype (bf16 by default)."""
    M, K = x.shape
    N = w.shape[1]
    tm = _pick_tile(M, tm, 8)
    tn = _pick_tile(N, tn, 128)
    tk = _pick_tile(K, tk, 128)
    grid = (M // tm, N // tn, K // tk)
    ob = jnp.dtype(out_dtype).itemsize
    need = (2 * (tm * tk * x.dtype.itemsize + tk * tn * w.dtype.itemsize + tn * 4)
            + 2 * tm * tn * ob + tm * tn * 4)
    return pl.pallas_call(
        partial(_matmul_kernel, relu=relu, n_k=grid[2]),
        out_shape=jax.ShapeDtypeStruct((M, N), out_dtype),
        grid=grid,
        in_specs=[
            pl.BlockSpec((tm, tk), lambda i, j, k: (i, k)),
            pl.BlockSpec((tk, tn), lambda i, j, k: (k, j)),
            pl.BlockSpec((1, tn), lambda i, j, k: (0, j)),
        ],
        out_specs=pl.BlockSpec((tm, tn), lambda i, j, k: (i, j)),
        scratch_shapes=[pltpu.VMEM((tm, tn), jnp.float32)],
        compiler_params=_cparams(("parallel", "parallel", "arbitrary"), need),
    )(x, w, b.reshape(1, N))


# ----------------------------------------------------------------------------
# Tiled linear with residual-add + LayerNorm fused into the epilogue (tn = N)
# ----------------------------------------------------------------------------
def _matmul_ln_kernel(x_ref, w_ref, b_ref, res_ref, g_ref, bb_ref, o_ref, acc_ref,
                      *, eps, n_k):
    @pl.when(pl.program_id(1) == 0)
    def _():
        acc_ref[...] = jnp.zeros_like(acc_ref)

    acc_ref[...] += jnp.dot(
        x_ref[...].astype(jnp.bfloat16),
        w_ref[...].astype(jnp.bfloat16),
        preferred_element_type=jnp.float32,
    )

    @pl.when(pl.program_id(1) == n_k - 1)
    def _():
        z = acc_ref[...] + b_ref[...] + res_ref[...].astype(jnp.float32)
        mu = jnp.mean(z, axis=-1, keepdims=True)
        zc = z - mu
        var = jnp.mean(zc * zc, axis=-1, keepdims=True)
        o_ref[...] = (zc * jax.lax.rsqrt(var + eps) * g_ref[...]
                      + bb_ref[...]).astype(o_ref.dtype)


def linear_add_layernorm(x, w, b, residual, gamma, beta, eps=1e-5,
                         out_dtype=jnp.bfloat16, tm=256, tk=512):
    """LayerNorm(residual + x @ w + b); full output row (tn = N) per block."""
    M, K = x.shape
    N = w.shape[1]
    tm = _pick_tile(M, tm, 8)
    tk = _pick_tile(K, tk, 128)
    grid = (M // tm, K // tk)
    ob = jnp.dtype(out_dtype).itemsize
    need = (2 * (tm * tk * x.dtype.itemsize + tk * N * w.dtype.itemsize
                 + tm * N * residual.dtype.itemsize + 3 * N * 4)
            + 2 * tm * N * ob + tm * N * 4)
    return pl.pallas_call(
        partial(_matmul_ln_kernel, eps=eps, n_k=grid[1]),
        out_shape=jax.ShapeDtypeStruct((M, N), out_dtype),
        grid=grid,
        in_specs=[
            pl.BlockSpec((tm, tk), lambda i, k: (i, k)),
            pl.BlockSpec((tk, N), lambda i, k: (k, 0)),
            pl.BlockSpec((1, N), lambda i, k: (0, 0)),
            pl.BlockSpec((tm, N), lambda i, k: (i, 0)),
            pl.BlockSpec((1, N), lambda i, k: (0, 0)),
            pl.BlockSpec((1, N), lambda i, k: (0, 0)),
        ],
        out_specs=pl.BlockSpec((tm, N), lambda i, k: (i, 0)),
        scratch_shapes=[pltpu.VMEM((tm, N), jnp.float32)],
        compiler_params=_cparams(("parallel", "arbitrary"), need),
    )(x, w, b.reshape(1, N), residual, gamma.reshape(1, N), beta.reshape(1, N))


# ----------------------------------------------------------------------------
# Head-major flash attention: grid (B, H, Lq-tiles, Lk-tiles), online softmax
# ----------------------------------------------------------------------------
def _flash_attn_kernel(q_ref, k_ref, v_ref, o_ref, m_sc, l_sc, acc_sc, *, scale):
    ki = pl.program_id(3)

    @pl.when(ki == 0)
    def _():
        m_sc[...] = jnp.full(m_sc.shape, -jnp.inf, m_sc.dtype)
        l_sc[...] = jnp.zeros_like(l_sc)
        acc_sc[...] = jnp.zeros_like(acc_sc)

    q = (q_ref[0, 0].astype(jnp.float32) * scale).astype(jnp.bfloat16)
    k = k_ref[0, 0].astype(jnp.bfloat16)
    # contract on dk directly (no explicit transpose)
    s = jax.lax.dot_general(q, k, (((1,), (1,)), ((), ())),
                            preferred_element_type=jnp.float32)        # (tq, tk)
    m_prev = m_sc[...]
    m_new = jnp.maximum(m_prev, jnp.max(s, axis=-1, keepdims=True))
    alpha = jnp.exp(m_prev - m_new)
    p = jnp.exp(s - m_new)
    l_sc[...] = alpha * l_sc[...] + jnp.sum(p, axis=-1, keepdims=True)
    acc_sc[...] = alpha * acc_sc[...] + jax.lax.dot_general(
        p.astype(jnp.bfloat16), v_ref[0, 0].astype(jnp.bfloat16),
        (((1,), (0,)), ((), ())), preferred_element_type=jnp.float32)
    m_sc[...] = m_new

    @pl.when(ki == pl.num_programs(3) - 1)
    def _():
        o_ref[0, 0] = (acc_sc[...] *
                       pl.reciprocal(l_sc[...], approx=True)).astype(o_ref.dtype)


def attention(q, k, v, out_dtype=jnp.bfloat16, tq=256, tk=512):
    """Head-major attention.  q: (B,H,Lq,dk), k/v: (B,H,Lk,dk) -> (B,H,Lq,dk)."""
    B, H, Lq, dk = q.shape
    Lk = k.shape[2]
    tq = _pick_tile(Lq, tq, 8)
    tk = _pick_tile(Lk, tk, 8)
    scale = 1.0 / math.sqrt(dk)
    grid = (B, H, Lq // tq, Lk // tk)
    need = (2 * (tq * dk + 2 * tk * dk) * q.dtype.itemsize
            + 2 * tq * dk * jnp.dtype(out_dtype).itemsize
            + (tq * dk + 2 * tq) * 4)
    return pl.pallas_call(
        partial(_flash_attn_kernel, scale=scale),
        out_shape=jax.ShapeDtypeStruct((B, H, Lq, dk), out_dtype),
        grid=grid,
        in_specs=[
            pl.BlockSpec((1, 1, tq, dk), lambda b, h, qi, ki: (b, h, qi, 0)),
            pl.BlockSpec((1, 1, tk, dk), lambda b, h, qi, ki: (b, h, ki, 0)),
            pl.BlockSpec((1, 1, tk, dk), lambda b, h, qi, ki: (b, h, ki, 0)),
        ],
        out_specs=pl.BlockSpec((1, 1, tq, dk), lambda b, h, qi, ki: (b, h, qi, 0)),
        scratch_shapes=[
            pltpu.VMEM((tq, 1), jnp.float32),     # running max
            pltpu.VMEM((tq, 1), jnp.float32),     # running denominator
            pltpu.VMEM((tq, dk), jnp.float32),    # output accumulator
        ],
        compiler_params=_cparams(
            ("parallel", "parallel", "parallel", "arbitrary"), need),
    )(q, k, v)


def multi_head_attention(q_in, kv_in, residual, p, n_heads, ln_g, ln_b, eps=1e-5):
    """Returns LayerNorm(residual + MHA(q_in, kv_in, kv_in)) as (B*Lq, D) bf16."""
    B, Lq, D = q_in.shape
    Lk = kv_in.shape[1]
    dk = D // n_heads
    q = linear(q_in.reshape(B * Lq, D), p["wq"], p["bq"])        # (B*Lq, D) bf16
    kv = linear(kv_in.reshape(B * Lk, D), p["wkv"], p["bkv"])    # (B*Lk, 2D) bf16 (fused K+V)
    # Head-major layout plumbing in the wrapper (no in-kernel lane slicing / concat).
    qh = q.reshape(B, Lq, n_heads, dk).transpose(0, 2, 1, 3)     # (B,H,Lq,dk)
    kv = kv.reshape(B, Lk, 2, n_heads, dk)
    kh = kv[:, :, 0].transpose(0, 2, 1, 3)                        # (B,H,Lk,dk)
    vh = kv[:, :, 1].transpose(0, 2, 1, 3)                        # (B,H,Lk,dk)
    ctx = attention(qh, kh, vh)                                   # (B,H,Lq,dk) bf16
    ctx2d = ctx.transpose(0, 2, 1, 3).reshape(B * Lq, D)
    # Output projection with residual-add + LayerNorm fused into the epilogue.
    return linear_add_layernorm(ctx2d, p["wo"], p["bo"], residual, ln_g, ln_b, eps=eps)


# ----------------------------------------------------------------------------
# Fused FFN + residual + LayerNorm: linear -> ReLU -> bf16 -> linear -> Add&LN
# ----------------------------------------------------------------------------
def _ffn_ln_kernel(x_ref, w1_ref, b1_ref, w2_ref, b2_ref, g_ref, bb_ref, o_ref, *, eps):
    x = x_ref[...].astype(jnp.bfloat16)
    h = jnp.dot(x, w1_ref[...].astype(jnp.bfloat16),
                preferred_element_type=jnp.float32) + b1_ref[...]
    h = jnp.maximum(h, 0.0).astype(jnp.bfloat16)       # bf16 hidden: halves VMEM footprint
    y = jnp.dot(h, w2_ref[...].astype(jnp.bfloat16),
                preferred_element_type=jnp.float32) + b2_ref[...]
    z = y + x_ref[...].astype(jnp.float32)             # FFN input doubles as the residual
    mu = jnp.mean(z, axis=-1, keepdims=True)
    zc = z - mu
    var = jnp.mean(zc * zc, axis=-1, keepdims=True)
    o_ref[...] = (zc * jax.lax.rsqrt(var + eps) * g_ref[...]
                  + bb_ref[...]).astype(o_ref.dtype)


def ffn_add_layernorm_fused(x, w1, b1, w2, b2, gamma, beta, eps=1e-5,
                            out_dtype=jnp.bfloat16, tm=256, vmem_need=0):
    N, D = x.shape
    Dh = w1.shape[1]
    tm = _pick_tile(N, tm, 8)
    grid = (N // tm,)
    return pl.pallas_call(
        partial(_ffn_ln_kernel, eps=eps),
        out_shape=jax.ShapeDtypeStruct((N, D), out_dtype),
        grid=grid,
        in_specs=[
            pl.BlockSpec((tm, D), lambda i: (i, 0)),
            pl.BlockSpec((D, Dh), lambda i: (0, 0)),
            pl.BlockSpec((1, Dh), lambda i: (0, 0)),
            pl.BlockSpec((Dh, D), lambda i: (0, 0)),
            pl.BlockSpec((1, D), lambda i: (0, 0)),
            pl.BlockSpec((1, D), lambda i: (0, 0)),
            pl.BlockSpec((1, D), lambda i: (0, 0)),
        ],
        out_specs=pl.BlockSpec((tm, D), lambda i: (i, 0)),
        compiler_params=_cparams(("parallel",), vmem_need),
    )(x, w1, b1.reshape(1, Dh), w2, b2.reshape(1, D),
      gamma.reshape(1, D), beta.reshape(1, D))


def feed_forward(x, p, eps=1e-5):
    """LayerNorm(x + FFN(x)); x: (N, D) -> (N, D) bf16."""
    N, D = x.shape
    Dh = p["ffn_w1"].shape[1]
    tm = _pick_tile(N, 256, 8)
    # Generation-aware fused-path budget: weights + hidden tile + double-buffered I/O.
    w_bytes = (D * Dh) * p["ffn_w1"].dtype.itemsize + (Dh * D) * p["ffn_w2"].dtype.itemsize
    hidden_bytes = tm * Dh * (4 + 2)                  # f32 matmul result + bf16 copy
    io_bytes = 2 * 2 * tm * D * x.dtype.itemsize + tm * D * 4
    need = w_bytes + hidden_bytes + io_bytes + (Dh + 3 * D) * 4
    if need <= int(0.7 * _VMEM_CAP):
        return ffn_add_layernorm_fused(x, p["ffn_w1"], p["ffn_b1"],
                                       p["ffn_w2"], p["ffn_b2"],
                                       p["ln3_g"], p["ln3_b"], eps=eps,
                                       tm=tm, vmem_need=need)
    # Fallback: hidden activation round-trips HBM in bf16; LN3 still fused into matmul 2.
    h = linear(x, p["ffn_w1"], p["ffn_b1"], relu=True)
    return linear_add_layernorm(h, p["ffn_w2"], p["ffn_b2"], x,
                                p["ln3_g"], p["ln3_b"], eps=eps)


# ----------------------------------------------------------------------------
# DecoderLayer forward (matches the PyTorch reference module)
# ----------------------------------------------------------------------------
def decoder_layer(dec_inputs, enc_outputs, params, n_heads):
    B, Ld, D = dec_inputs.shape
    x = dec_inputs.astype(jnp.bfloat16)               # bf16 activations in HBM
    enc = enc_outputs.astype(jnp.bfloat16)
    x2d = x.reshape(B * Ld, D)

    out = multi_head_attention(x, x, x2d, params["self_attn"], n_heads,
                               params["ln1_g"], params["ln1_b"])          # LN1 fused
    out2 = multi_head_attention(out.reshape(B, Ld, D), enc, out,
                                params["cross_attn"], n_heads,
                                params["ln2_g"], params["ln2_b"])         # LN2 fused
    out3 = feed_forward(out2, params)                                     # LN3 fused
    return out3.reshape(B, Ld, D)


# ----------------------------------------------------------------------------
# Pure-JAX reference (f32) for numerical validation
# ----------------------------------------------------------------------------
def _ref_mha(q_in, kv_in, p, n_heads):
    B, Lq, D = q_in.shape
    Lk = kv_in.shape[1]
    dk = D // n_heads
    q = q_in @ p["wq"] + p["bq"]
    kv = kv_in @ p["wkv"] + p["bkv"]
    k, v = kv[..., :D], kv[..., D:]
    split = lambda t, L: t.reshape(B, L, n_heads, dk).transpose(0, 2, 1, 3)
    qh, kh, vh = split(q, Lq), split(k, Lk), split(v, Lk)
    s = jnp.einsum("bhqd,bhkd->bhqk", qh, kh) / math.sqrt(dk)
    a = jax.nn.softmax(s, axis=-1)
    o = jnp.einsum("bhqk,bhkd->bhqd", a, vh).transpose(0, 2, 1, 3).reshape(B, Lq, D)
    return o @ p["wo"] + p["bo"]


def _ref_ln(z, g, b, eps=1e-5):
    m = jnp.mean(z, -1, keepdims=True)
    v = jnp.mean((z - m) ** 2, -1, keepdims=True)
    return (z - m) / jnp.sqrt(v + eps) * g + b


def ref_decoder_layer(dec_inputs, enc_outputs, params, n_heads):
    sa = _ref_mha(dec_inputs, dec_inputs, params["self_attn"], n_heads)
    out = _ref_ln(dec_inputs + sa, params["ln1_g"], params["ln1_b"])
    ca = _ref_mha(out, enc_outputs, params["cross_attn"], n_heads)
    out2 = _ref_ln(out + ca, params["ln2_g"], params["ln2_b"])
    h = jnp.maximum(out2 @ params["ffn_w1"] + params["ffn_b1"], 0.0)
    ff = h @ params["ffn_w2"] + params["ffn_b2"]
    return _ref_ln(out2 + ff, params["ln3_g"], params["ln3_b"])


# ----------------------------------------------------------------------------
# Deterministic parameter init + bf16-for-HBM cast
# ----------------------------------------------------------------------------
def _init_linear(key, din, dout, scale=0.02):
    kw, kb = jax.random.split(key)
    return (scale * jax.random.normal(kw, (din, dout), jnp.float32),
            scale * jax.random.normal(kb, (dout,), jnp.float32))


def _init_mha(key, d_model):
    kq, kk, kv, ko = jax.random.split(key, 4)
    wq, bq = _init_linear(kq, d_model, d_model)
    wk, bk = _init_linear(kk, d_model, d_model)
    wv, bv = _init_linear(kv, d_model, d_model)
    wo, bo = _init_linear(ko, d_model, d_model)
    return {"wq": wq, "bq": bq,
            "wkv": jnp.concatenate([wk, wv], axis=1),     # fused K+V projection
            "bkv": jnp.concatenate([bk, bv], axis=0),
            "wo": wo, "bo": bo}


def init_decoder_layer_params(key, d_model):
    k1, k2, k3, k4 = jax.random.split(key, 4)
    w1, b1 = _init_linear(k3, d_model, 4 * d_model)
    w2, b2 = _init_linear(k4, 4 * d_model, d_model)
    ones = jnp.ones((d_model,), jnp.float32)
    zeros = jnp.zeros((d_model,), jnp.float32)
    return {
        "self_attn": _init_mha(k1, d_model),
        "cross_attn": _init_mha(k2, d_model),
        "ffn_w1": w1, "ffn_b1": b1, "ffn_w2": w2, "ffn_b2": b2,
        "ln1_g": ones, "ln1_b": zeros,
        "ln2_g": ones, "ln2_b": zeros,
        "ln3_g": ones, "ln3_b": zeros,
    }


def cast_params_for_device(params):
    """bf16 HBM storage for the large projection weights; biases / LN params stay f32."""
    def mha(p):
        return {"wq": p["wq"].astype(jnp.bfloat16), "bq": p["bq"],
                "wkv": p["wkv"].astype(jnp.bfloat16), "bkv": p["bkv"],
                "wo": p["wo"].astype(jnp.bfloat16), "bo": p["bo"]}
    dp = dict(params)
    dp["self_attn"] = mha(params["self_attn"])
    dp["cross_attn"] = mha(params["cross_attn"])
    dp["ffn_w1"] = params["ffn_w1"].astype(jnp.bfloat16)
    dp["ffn_w2"] = params["ffn_w2"].astype(jnp.bfloat16)
    return dp


# ----------------------------------------------------------------------------
if __name__ == "__main__":
    B, L_DEC, L_ENC = 2, 8, 8
    D_MODEL, N_HEADS = 32, 4

    key = jax.random.PRNGKey(0)
    kp, kd, ke = jax.random.split(key, 3)
    params = init_decoder_layer_params(kp, D_MODEL)      # f32 master copy (for reference)
    dev_params = cast_params_for_device(params)          # bf16 weights in HBM
    dec_inputs = jax.random.normal(kd, (B, L_DEC, D_MODEL), jnp.float32)
    enc_outputs = jax.random.normal(ke, (B, L_ENC, D_MODEL), jnp.float32)

    fwd = jax.jit(partial(decoder_layer, n_heads=N_HEADS))
    out = jax.block_until_ready(fwd(dec_inputs, enc_outputs, dev_params))

    assert out.shape == (B, L_DEC, D_MODEL), out.shape
    out_f32 = out.astype(jnp.float32)
    assert bool(jnp.all(jnp.isfinite(out_f32)))

    ref = ref_decoder_layer(dec_inputs, enc_outputs, params, N_HEADS)
    err = float(jnp.max(jnp.abs(out_f32 - ref)))
    assert err < 1.5e-1, f"max abs err vs f32 reference: {err}"   # bf16-storage tolerance
    print("KERNEL_OK")
</pallas_src>

<mosaic_0001>
module attributes {stable_mosaic.version = 11 : i64} {
  func.func @_matmul_kernel(%arg0: i32, %arg1: i32, %arg2: i32, %arg3: memref<16x32xbf16, #tpu.memory_space<vmem>>, %arg4: memref<32x64xbf16, #tpu.memory_space<vmem>>, %arg5: memref<1x64xf32, #tpu.memory_space<vmem>>, %arg6: memref<16x64xbf16, #tpu.memory_space<vmem>>, %arg7: memref<16x64xf32, #tpu.memory_space<vmem>>) attributes {dimension_semantics = [#tpu.dimension_semantics<parallel>, #tpu.dimension_semantics<parallel>, #tpu.dimension_semantics<arbitrary>], iteration_bounds = array<i64: 1, 1, 1>, scalar_prefetch = 0 : i64, scratch_operands = 1 : i64, tpu.core_type = #tpu.core_type<tc>, window_params = [{transform_indices = @transform_0, window_bounds = array<i64: 16, 32>}, {transform_indices = @transform_1, window_bounds = array<i64: 32, 64>}, {transform_indices = @transform_2, window_bounds = array<i64: 1, 64>}, {transform_indices = @transform_3, window_bounds = array<i64: 16, 64>}]} {
    %c0_i32 = arith.constant 0 : i32
    %0 = arith.cmpi eq, %arg2, %c0_i32 : i32
    %1 = arith.extui %0 : i1 to i32
    %c0_i32_0 = arith.constant 0 : i32
    %2 = arith.cmpi ne, %1, %c0_i32_0 : i32
    scf.if %2 {
      %cst_10 = arith.constant 0.000000e+00 : f32
      %12 = vector.broadcast %cst_10 : f32 to vector<16x64xf32>
      %c0_11 = arith.constant 0 : index
      %c0_12 = arith.constant 0 : index
      %13 = vector.load %arg7[%c0_11, %c0_12] : memref<16x64xf32, #tpu.memory_space<vmem>>, vector<16x64xf32>
      tpu.vector_store %arg7[%c0_11, %c0_12], %12 {strides = array<i32>} : memref<16x64xf32, #tpu.memory_space<vmem>>, vector<16x64xf32>,
    } else {
    }
    %c0 = arith.constant 0 : index
    %c0_1 = arith.constant 0 : index
    %3 = vector.load %arg7[%c0, %c0_1] : memref<16x64xf32, #tpu.memory_space<vmem>>, vector<16x64xf32>
    %c0_2 = arith.constant 0 : index
    %c0_3 = arith.constant 0 : index
    %4 = vector.load %arg3[%c0_2, %c0_3] : memref<16x32xbf16, #tpu.memory_space<vmem>>, vector<16x32xbf16>
    %c0_4 = arith.constant 0 : index
    %c0_5 = arith.constant 0 : index
    %5 = vector.load %arg4[%c0_4, %c0_5] : memref<32x64xbf16, #tpu.memory_space<vmem>>, vector<32x64xbf16>
    %cst = arith.constant dense<0.000000e+00> : vector<16x64xf32>
    %6 = tpu.matmul %4, %5, %cst {dimension_numbers = #tpu.dot_dimension_numbers<[1], [0], [0], [1], [0, 0, 1, 1], [], []>} : vector<16x32xbf16>, vector<32x64xbf16>, vector<16x64xf32> -> vector<16x64xf32>
    %7 = arith.addf %3, %6 : vector<16x64xf32>
    %c0_6 = arith.constant 0 : index
    %c0_7 = arith.constant 0 : index
    %8 = vector.load %arg7[%c0_6, %c0_7] : memref<16x64xf32, #tpu.memory_space<vmem>>, vector<16x64xf32>
    tpu.vector_store %arg7[%c0_6, %c0_7], %7 {strides = array<i32>} : memref<16x64xf32, #tpu.memory_space<vmem>>, vector<16x64xf32>,
    %c0_i32_8 = arith.constant 0 : i32
    %9 = arith.cmpi eq, %arg2, %c0_i32_8 : i32
    %10 = arith.extui %9 : i1 to i32
    %c0_i32_9 = arith.constant 0 : i32
    %11 = arith.cmpi ne, %10, %c0_i32_9 : i32
    scf.if %11 {
      %c0_10 = arith.constant 0 : index
      %c0_11 = arith.constant 0 : index
      %12 = vector.load %arg7[%c0_10, %c0_11] : memref<16x64xf32, #tpu.memory_space<vmem>>, vector<16x64xf32>
      %c0_12 = arith.constant 0 : index
      %c0_13 = arith.constant 0 : index
      %13 = vector.load %arg5[%c0_12, %c0_13] : memref<1x64xf32, #tpu.memory_space<vmem>>, vector<1x64xf32>
      %14 = vector.broadcast %13 : vector<1x64xf32> to vector<16x64xf32>
      %15 = arith.addf %12, %14 : vector<16x64xf32>
      %16 = arith.truncf %15 : vector<16x64xf32> to vector<16x64xbf16>
      %c0_14 = arith.constant 0 : index
      %c0_15 = arith.constant 0 : index
      %17 = vector.load %arg6[%c0_14, %c0_15] : memref<16x64xbf16, #tpu.memory_space<vmem>>, vector<16x64xbf16>
      tpu.vector_store %arg6[%c0_14, %c0_15], %16 {strides = array<i32>} : memref<16x64xbf16, #tpu.memory_space<vmem>>, vector<16x64xbf16>,
    } else {
    }
    return
  }
  func.func @transform_0(%arg0: i32, %arg1: i32, %arg2: i32) -> (i32, i32) {
    %c0_i32 = arith.constant 0 : i32
    return %arg0, %arg2 : i32, i32
  }
  func.func @transform_1(%arg0: i32, %arg1: i32, %arg2: i32) -> (i32, i32) {
    %c0_i32 = arith.constant 0 : i32
    return %arg2, %arg1 : i32, i32
  }
  func.func @transform_2(%arg0: i32, %arg1: i32, %arg2: i32) -> (i32, i32) {
    %c0_i32 = arith.constant 0 : i32
    %c0_i32_0 = arith.constant 0 : i32
    return %c0_i32, %arg1 : i32, i32
  }
  func.func @transform_3(%arg0: i32, %arg1: i32, %arg2: i32) -> (i32, i32) {
    %c0_i32 = arith.constant 0 : i32
    return %arg0, %arg1 : i32, i32
  }
}

module attributes {stable_mosaic.version = 11 : i64} {
  func.func @_matmul_kernel(%arg0: i32, %arg1: i32, %arg2: i32, %arg3: memref<16x32xbf16, #tpu.memory_space<vmem>>, %arg4: memref<32x32xbf16, #tpu.memory_space<vmem>>, %arg5: memref<1x32xf32, #tpu.memory_space<vmem>>, %arg6: memref<16x32xbf16, #tpu.memory_space<vmem>>, %arg7: memref<16x32xf32, #tpu.memory_space<vmem>>) attributes {dimension_semantics = [#tpu.dimension_semantics<parallel>, #tpu.dimension_semantics<parallel>, #tpu.dimension_semantics<arbitrary>], iteration_bounds = array<i64: 1, 1, 1>, scalar_prefetch = 0 : i64, scratch_operands = 1 : i64, tpu.core_type = #tpu.core_type<tc>, window_params = [{transform_indices = @transform_0, window_bounds = array<i64: 16, 32>}, {transform_indices = @transform_1, window_bounds = array<i64: 32, 32>}, {transform_indices = @transform_2, window_bounds = array<i64: 1, 32>}, {transform_indices = @transform_3, window_bounds = array<i64: 16, 32>}]} {
    %c0_i32 = arith.constant 0 : i32
    %0 = arith.cmpi eq, %arg2, %c0_i32 : i32
    %1 = arith.extui %0 : i1 to i32
    %c0_i32_0 = arith.constant 0 : i32
    %2 = arith.cmpi ne, %1, %c0_i32_0 : i32
    scf.if %2 {
      %cst_10 = arith.constant 0.000000e+00 : f32
      %12 = vector.broadcast %cst_10 : f32 to vector<16x32xf32>
      %c0_11 = arith.constant 0 : index
      %c0_12 = arith.constant 0 : index
      %13 = vector.load %arg7[%c0_11, %c0_12] : memref<16x32xf32, #tpu.memory_space<vmem>>, vector<16x32xf32>
      tpu.vector_store %arg7[%c0_11, %c0_12], %12 {strides = array<i32>} : memref<16x32xf32, #tpu.memory_space<vmem>>, vector<16x32xf32>,
    } else {
    }
    %c0 = arith.constant 0 : index
    %c0_1 = arith.constant 0 : index
    %3 = vector.load %arg7[%c0, %c0_1] : memref<16x32xf32, #tpu.memory_space<vmem>>, vector<16x32xf32>
    %c0_2 = arith.constant 0 : index
    %c0_3 = arith.constant 0 : index
    %4 = vector.load %arg3[%c0_2, %c0_3] : memref<16x32xbf16, #tpu.memory_space<vmem>>, vector<16x32xbf16>
    %c0_4 = arith.constant 0 : index
    %c0_5 = arith.constant 0 : index
    %5 = vector.load %arg4[%c0_4, %c0_5] : memref<32x32xbf16, #tpu.memory_space<vmem>>, vector<32x32xbf16>
    %cst = arith.constant dense<0.000000e+00> : vector<16x32xf32>
    %6 = tpu.matmul %4, %5, %cst {dimension_numbers = #tpu.dot_dimension_numbers<[1], [0], [0], [1], [0, 0, 1, 1], [], []>} : vector<16x32xbf16>, vector<32x32xbf16>, vector<16x32xf32> -> vector<16x32xf32>
    %7 = arith.addf %3, %6 : vector<16x32xf32>
    %c0_6 = arith.constant 0 : index
    %c0_7 = arith.constant 0 : index
    %8 = vector.load %arg7[%c0_6, %c0_7] : memref<16x32xf32, #tpu.memory_space<vmem>>, vector<16x32xf32>
    tpu.vector_store %arg7[%c0_6, %c0_7], %7 {strides = array<i32>} : memref<16x32xf32, #tpu.memory_space<vmem>>, vector<16x32xf32>,
    %c0_i32_8 = arith.constant 0 : i32
    %9 = arith.cmpi eq, %arg2, %c0_i32_8 : i32
    %10 = arith.extui %9 : i1 to i32
    %c0_i32_9 = arith.constant 0 : i32
    %11 = arith.cmpi ne, %10, %c0_i32_9 : i32
    scf.if %11 {
      %c0_10 = arith.constant 0 : index
      %c0_11 = arith.constant 0 : index
      %12 = vector.load %arg7[%c0_10, %c0_11] : memref<16x32xf32, #tpu.memory_space<vmem>>, vector<16x32xf32>
      %c0_12 = arith.constant 0 : index
      %c0_13 = arith.constant 0 : index
      %13 = vector.load %arg5[%c0_12, %c0_13] : memref<1x32xf32, #tpu.memory_space<vmem>>, vector<1x32xf32>
      %14 = vector.broadcast %13 : vector<1x32xf32> to vector<16x32xf32>
      %15 = arith.addf %12, %14 : vector<16x32xf32>
      %16 = arith.truncf %15 : vector<16x32xf32> to vector<16x32xbf16>
      %c0_14 = arith.constant 0 : index
      %c0_15 = arith.constant 0 : index
      %17 = vector.load %arg6[%c0_14, %c0_15] : memref<16x32xbf16, #tpu.memory_space<vmem>>, vector<16x32xbf16>
      tpu.vector_store %arg6[%c0_14, %c0_15], %16 {strides = array<i32>} : memref<16x32xbf16, #tpu.memory_space<vmem>>, vector<16x32xbf16>,
    } else {
    }
    return
  }
  func.func @transform_0(%arg0: i32, %arg1: i32, %arg2: i32) -> (i32, i32) {
    %c0_i32 = arith.constant 0 : i32
    return %arg0, %arg2 : i32, i32
  }
  func.func @transform_1(%arg0: i32, %arg1: i32, %arg2: i32) -> (i32, i32) {
    %c0_i32 = arith.constant 0 : i32
    return %arg2, %arg1 : i32, i32
  }
  func.func @transform_2(%arg0: i32, %arg1: i32, %arg2: i32) -> (i32, i32) {
    %c0_i32 = arith.constant 0 : i32
    %c0_i32_0 = arith.constant 0 : i32
    return %c0_i32, %arg1 : i32, i32
  }
  func.func @transform_3(%arg0: i32, %arg1: i32, %arg2: i32) -> (i32, i32) {
    %c0_i32 = arith.constant 0 : i32
    return %arg0, %arg1 : i32, i32
  }
}

module attributes {stable_mosaic.version = 11 : i64} {
  func.func @_flash_attn_kernel(%arg0: i32, %arg1: i32, %arg2: i32, %arg3: i32, %arg4: memref<1x1x8x8xbf16, #tpu.memory_space<vmem>>, %arg5: memref<1x1x8x8xbf16, #tpu.memory_space<vmem>>, %arg6: memref<1x1x8x8xbf16, #tpu.memory_space<vmem>>, %arg7: memref<1x1x8x8xbf16, #tpu.memory_space<vmem>>, %arg8: memref<8x1xf32, #tpu.memory_space<vmem>>, %arg9: memref<8x1xf32, #tpu.memory_space<vmem>>, %arg10: memref<8x8xf32, #tpu.memory_space<vmem>>) attributes {dimension_semantics = [#tpu.dimension_semantics<parallel>, #tpu.dimension_semantics<parallel>, #tpu.dimension_semantics<parallel>, #tpu.dimension_semantics<arbitrary>], iteration_bounds = array<i64: 2, 4, 1, 1>, scalar_prefetch = 0 : i64, scratch_operands = 3 : i64, tpu.core_type = #tpu.core_type<tc>, window_params = [{transform_indices = @transform_0, window_bounds = array<i64: 1, 1, 8, 8>}, {transform_indices = @transform_1, window_bounds = array<i64: 1, 1, 8, 8>}, {transform_indices = @transform_2, window_bounds = array<i64: 1, 1, 8, 8>}, {transform_indices = @transform_3, window_bounds = array<i64: 1, 1, 8, 8>}]} {
    %c0_i32 = arith.constant 0 : i32
    %0 = arith.cmpi eq, %arg3, %c0_i32 : i32
    %1 = arith.extui %0 : i1 to i32
    %c0_i32_0 = arith.constant 0 : i32
    %2 = arith.cmpi ne, %1, %c0_i32_0 : i32
    scf.if %2 {
      %cst_30 = arith.constant 0xFF800000 : f32
      %40 = vector.broadcast %cst_30 : f32 to vector<8x1xf32>
      %c0_31 = arith.constant 0 : index
      %c0_32 = arith.constant 0 : index
      %41 = vector.load %arg8[%c0_31, %c0_32] : memref<8x1xf32, #tpu.memory_space<vmem>>, vector<8x1xf32>
      tpu.vector_store %arg8[%c0_31, %c0_32], %40 {strides = array<i32>} : memref<8x1xf32, #tpu.memory_space<vmem>>, vector<8x1xf32>,
      %cst_33 = arith.constant 0.000000e+00 : f32
      %42 = vector.broadcast %cst_33 : f32 to vector<8x1xf32>
      %c0_34 = arith.constant 0 : index
      %c0_35 = arith.constant 0 : index
      %43 = vector.load %arg9[%c0_34, %c0_35] : memref<8x1xf32, #tpu.memory_space<vmem>>, vector<8x1xf32>
      tpu.vector_store %arg9[%c0_34, %c0_35], %42 {strides = array<i32>} : memref<8x1xf32, #tpu.memory_space<vmem>>, vector<8x1xf32>,
      %cst_36 = arith.constant 0.000000e+00 : f32
      %44 = vector.broadcast %cst_36 : f32 to vector<8x8xf32>
      %c0_37 = arith.constant 0 : index
      %c0_38 = arith.constant 0 : index
      %45 = vector.load %arg10[%c0_37, %c0_38] : memref<8x8xf32, #tpu.memory_space<vmem>>, vector<8x8xf32>
      tpu.vector_store %arg10[%c0_37, %c0_38], %44 {strides = array<i32>} : memref<8x8xf32, #tpu.memory_space<vmem>>, vector<8x8xf32>,
    } else {
    }
    %c0 = arith.constant 0 : index
    %c0_1 = arith.constant 0 : index
    %c0_2 = arith.constant 0 : index
    %c0_3 = arith.constant 0 : index
    %3 = vector.load %arg4[%c0, %c0_1, %c0_2, %c0_3] : memref<1x1x8x8xbf16, #tpu.memory_space<vmem>>, vector<1x1x8x8xbf16>
    %4 = vector.shape_cast %3 : vector<1x1x8x8xbf16> to vector<8x8xbf16>
    %5 = arith.extf %4 : vector<8x8xbf16> to vector<8x8xf32>
    %cst = arith.constant 0.353553385 : f32
    %6 = vector.broadcast %cst : f32 to vector<8x8xf32>
    %7 = arith.mulf %5, %6 : vector<8x8xf32>
    %8 = arith.truncf %7 : vector<8x8xf32> to vector<8x8xbf16>
    %c0_4 = arith.constant 0 : index
    %c0_5 = arith.constant 0 : index
    %c0_6 = arith.constant 0 : index
    %c0_7 = arith.constant 0 : index
    %9 = vector.load %arg5[%c0_4, %c0_5, %c0_6, %c0_7] : memref<1x1x8x8xbf16, #tpu.memory_space<vmem>>, vector<1x1x8x8xbf16>
    %10 = vector.shape_cast %9 : vector<1x1x8x8xbf16> to vector<8x8xbf16>
    %cst_8 = arith.constant dense<0.000000e+00> : vector<8x8xf32>
    %11 = tpu.matmul %8, %10, %cst_8 {dimension_numbers = #tpu.dot_dimension_numbers<[1], [1], [0], [0], [0, 0, 1, 0], [], []>} : vector<8x8xbf16>, vector<8x8xbf16>, vector<8x8xf32> -> vector<8x8xf32>
    %c0_9 = arith.constant 0 : index
    %c0_10 = arith.constant 0 : index
    %12 = vector.load %arg8[%c0_9, %c0_10] : memref<8x1xf32, #tpu.memory_space<vmem>>, vector<8x1xf32>
    %cst_11 = arith.constant dense<0xFF800000> : vector<8xf32>
    %13 = vector.multi_reduction <maximumf>, %11, %cst_11 [1] : vector<8x8xf32> to vector<8xf32>
    %14 = vector.shape_cast %13 : vector<8xf32> to vector<8x1xf32>
    %15 = arith.maximumf %12, %14 : vector<8x1xf32>
    %16 = arith.subf %12, %15 : vector<8x1xf32>
    %17 = math.exp %16 : vector<8x1xf32>
    %18 = vector.broadcast %15 : vector<8x1xf32> to vector<8x8xf32>
    %19 = arith.subf %11, %18 : vector<8x8xf32>
    %20 = math.exp %19 : vector<8x8xf32>
    %c0_12 = arith.constant 0 : index
    %c0_13 = arith.constant 0 : index
    %21 = vector.load %arg9[%c0_12, %c0_13] : memref<8x1xf32, #tpu.memory_space<vmem>>, vector<8x1xf32>
    %22 = arith.mulf %17, %21 : vector<8x1xf32>
    %cst_14 = arith.constant dense<0.000000e+00> : vector<8xf32>
    %23 = vector.multi_reduction <add>, %20, %cst_14 [1] : vector<8x8xf32> to vector<8xf32>
    %24 = vector.shape_cast %23 : vector<8xf32> to vector<8x1xf32>
    %25 = arith.addf %22, %24 : vector<8x1xf32>
    %c0_15 = arith.constant 0 : index
    %c0_16 = arith.constant 0 : index
    %26 = vector.load %arg9[%c0_15, %c0_16] : memref<8x1xf32, #tpu.memory_space<vmem>>, vector<8x1xf32>
    tpu.vector_store %arg9[%c0_15, %c0_16], %25 {strides = array<i32>} : memref<8x1xf32, #tpu.memory_space<vmem>>, vector<8x1xf32>,
    %c0_17 = arith.constant 0 : index
    %c0_18 = arith.constant 0 : index
    %27 = vector.load %arg10[%c0_17, %c0_18] : memref<8x8xf32, #tpu.memory_space<vmem>>, vector<8x8xf32>
    %28 = vector.broadcast %17 : vector<8x1xf32> to vector<8x8xf32>
    %29 = arith.mulf %28, %27 : vector<8x8xf32>
    %30 = arith.truncf %20 : vector<8x8xf32> to vector<8x8xbf16>
    %c0_19 = arith.constant 0 : index
    %c0_20 = arith.constant 0 : index
    %c0_21 = arith.constant 0 : index
    %c0_22 = arith.constant 0 : index
    %31 = vector.load %arg6[%c0_19, %c0_20, %c0_21, %c0_22] : memref<1x1x8x8xbf16, #tpu.memory_space<vmem>>, vector<1x1x8x8xbf16>
    %32 = vector.shape_cast %31 : vector<1x1x8x8xbf16> to vector<8x8xbf16>
    %cst_23 = arith.constant dense<0.000000e+00> : vector<8x8xf32>
    %33 = tpu.matmul %30, %32, %cst_23 {dimension_numbers = #tpu.dot_dimension_numbers<[1], [0], [0], [1], [0, 0, 1, 1], [], []>} : vector<8x8xbf16>, vector<8x8xbf16>, vector<8x8xf32> -> vector<8x8xf32>
    %34 = arith.addf %29, %33 : vector<8x8xf32>
    %c0_24 = arith.constant 0 : index
    %c0_25 = arith.constant 0 : index
    %35 = vector.load %arg10[%c0_24, %c0_25] : memref<8x8xf32, #tpu.memory_space<vmem>>, vector<8x8xf32>
    tpu.vector_store %arg10[%c0_24, %c0_25], %34 {strides = array<i32>} : memref<8x8xf32, #tpu.memory_space<vmem>>, vector<8x8xf32>,
    %c0_26 = arith.constant 0 : index
    %c0_27 = arith.constant 0 : index
    %36 = vector.load %arg8[%c0_26, %c0_27] : memref<8x1xf32, #tpu.memory_space<vmem>>, vector<8x1xf32>
    tpu.vector_store %arg8[%c0_26, %c0_27], %15 {strides = array<i32>} : memref<8x1xf32, #tpu.memory_space<vmem>>, vector<8x1xf32>,
    %c0_i32_28 = arith.constant 0 : i32
    %37 = arith.cmpi eq, %arg3, %c0_i32_28 : i32
    %38 = arith.extui %37 : i1 to i32
    %c0_i32_29 = arith.constant 0 : i32
    %39 = arith.cmpi ne, %38, %c0_i32_29 : i32
    scf.if %39 {
      %c0_30 = arith.constant 0 : index
      %c0_31 = arith.constant 0 : index
      %40 = vector.load %arg10[%c0_30, %c0_31] : memref<8x8xf32, #tpu.memory_space<vmem>>, vector<8x8xf32>
      %c0_32 = arith.constant 0 : index
      %c0_33 = arith.constant 0 : index
      %41 = vector.load %arg9[%c0_32, %c0_33] : memref<8x1xf32, #tpu.memory_space<vmem>>, vector<8x1xf32>
      %42 = tpu.reciprocal %41 {approx = true} : vector<8x1xf32> -> vector<8x1xf32>
      %43 = vector.broadcast %42 : vector<8x1xf32> to vector<8x8xf32>
      %44 = arith.mulf %40, %43 : vector<8x8xf32>
      %45 = arith.truncf %44 : vector<8x8xf32> to vector<8x8xbf16>
      %c0_34 = arith.constant 0 : index
      %c0_35 = arith.constant 0 : index
      %c0_36 = arith.constant 0 : index
      %c0_37 = arith.constant 0 : index
      %46 = vector.load %arg7[%c0_34, %c0_35, %c0_36, %c0_37] : memref<1x1x8x8xbf16, #tpu.memory_space<vmem>>, vector<1x1x8x8xbf16>
      %47 = vector.shape_cast %46 : vector<1x1x8x8xbf16> to vector<8x8xbf16>
      %48 = vector.shape_cast %45 : vector<8x8xbf16> to vector<1x1x8x8xbf16>
      tpu.vector_store %arg7[%c0_34, %c0_35, %c0_36, %c0_37], %48 {strides = array<i32>} : memref<1x1x8x8xbf16, #tpu.memory_space<vmem>>, vector<1x1x8x8xbf16>,
    } else {
    }
    return
  }
  func.func @transform_0(%arg0: i32, %arg1: i32, %arg2: i32, %arg3: i32) -> (i32, i32, i32, i32) {
    %c0_i32 = arith.constant 0 : i32
    %c0_i32_0 = arith.constant 0 : i32
    return %arg0, %arg1, %arg2, %c0_i32 : i32, i32, i32, i32
  }
  func.func @transform_1(%arg0: i32, %arg1: i32, %arg2: i32, %arg3: i32) -> (i32, i32, i32, i32) {
    %c0_i32 = arith.constant 0 : i32
    %c0_i32_0 = arith.constant 0 : i32
    return %arg0, %arg1, %arg3, %c0_i32 : i32, i32, i32, i32
  }
  func.func @transform_2(%arg0: i32, %arg1: i32, %arg2: i32, %arg3: i32) -> (i32, i32, i32, i32) {
    %c0_i32 = arith.constant 0 : i32
    %c0_i32_0 = arith.constant 0 : i32
    return %arg0, %arg1, %arg3, %c0_i32 : i32, i32, i32, i32
  }
  func.func @transform_3(%arg0: i32, %arg1: i32, %arg2: i32, %arg3: i32) -> (i32, i32, i32, i32) {
    %c0_i32 = arith.constant 0 : i32
    %c0_i32_0 = arith.constant 0 : i32
    return %arg0, %arg1, %arg2, %c0_i32 : i32, i32, i32, i32
  }
}

module attributes {stable_mosaic.version = 11 : i64} {
  func.func @_matmul_ln_kernel(%arg0: i32, %arg1: i32, %arg2: memref<16x32xbf16, #tpu.memory_space<vmem>>, %arg3: memref<32x32xbf16, #tpu.memory_space<vmem>>, %arg4: memref<1x32xf32, #tpu.memory_space<vmem>>, %arg5: memref<16x32xbf16, #tpu.memory_space<vmem>>, %arg6: memref<1x32xf32, #tpu.memory_space<vmem>>, %arg7: memref<1x32xf32, #tpu.memory_space<vmem>>, %arg8: memref<16x32xbf16, #tpu.memory_space<vmem>>, %arg9: memref<16x32xf32, #tpu.memory_space<vmem>>) attributes {dimension_semantics = [#tpu.dimension_semantics<parallel>, #tpu.dimension_semantics<arbitrary>], iteration_bounds = array<i64: 1, 1>, scalar_prefetch = 0 : i64, scratch_operands = 1 : i64, tpu.core_type = #tpu.core_type<tc>, window_params = [{transform_indices = @transform_0, window_bounds = array<i64: 16, 32>}, {transform_indices = @transform_1, window_bounds = array<i64: 32, 32>}, {pipeline_mode = #tpu.pipeline_mode<synchronous>, transform_indices = @transform_2, window_bounds = array<i64: 1, 32>}, {transform_indices = @transform_3, window_bounds = array<i64: 16, 32>}, {pipeline_mode = #tpu.pipeline_mode<synchronous>, transform_indices = @transform_4, window_bounds = array<i64: 1, 32>}, {pipeline_mode = #tpu.pipeline_mode<synchronous>, transform_indices = @transform_5, window_bounds = array<i64: 1, 32>}, {transform_indices = @transform_6, window_bounds = array<i64: 16, 32>}]} {
    %c0_i32 = arith.constant 0 : i32
    %0 = arith.cmpi eq, %arg1, %c0_i32 : i32
    %1 = arith.extui %0 : i1 to i32
    %c0_i32_0 = arith.constant 0 : i32
    %2 = arith.cmpi ne, %1, %c0_i32_0 : i32
    scf.if %2 {
      %cst_10 = arith.constant 0.000000e+00 : f32
      %12 = vector.broadcast %cst_10 : f32 to vector<16x32xf32>
      %c0_11 = arith.constant 0 : index
      %c0_12 = arith.constant 0 : index
      %13 = vector.load %arg9[%c0_11, %c0_12] : memref<16x32xf32, #tpu.memory_space<vmem>>, vector<16x32xf32>
      tpu.vector_store %arg9[%c0_11, %c0_12], %12 {strides = array<i32>} : memref<16x32xf32, #tpu.memory_space<vmem>>, vector<16x32xf32>,
    } else {
    }
    %c0 = arith.constant 0 : index
    %c0_1 = arith.constant 0 : index
    %3 = vector.load %arg9[%c0, %c0_1] : memref<16x32xf32, #tpu.memory_space<vmem>>, vector<16x32xf32>
    %c0_2 = arith.constant 0 : index
    %c0_3 = arith.constant 0 : index
    %4 = vector.load %arg2[%c0_2, %c0_3] : memref<16x32xbf16, #tpu.memory_space<vmem>>, vector<16x32xbf16>
    %c0_4 = arith.constant 0 : index
    %c0_5 = arith.constant 0 : index
    %5 = vector.load %arg3[%c0_4, %c0_5] : memref<32x32xbf16, #tpu.memory_space<vmem>>, vector<32x32xbf16>
    %cst = arith.constant dense<0.000000e+00> : vector<16x32xf32>
    %6 = tpu.matmul %4, %5, %cst {dimension_numbers = #tpu.dot_dimension_numbers<[1], [0], [0], [1], [0, 0, 1, 1], [], []>} : vector<16x32xbf16>, vector<32x32xbf16>, vector<16x32xf32> -> vector<16x32xf32>
    %7 = arith.addf %3, %6 : vector<16x32xf32>
    %c0_6 = arith.constant 0 : index
    %c0_7 = arith.constant 0 : index
    %8 = vector.load %arg9[%c0_6, %c0_7] : memref<16x32xf32, #tpu.memory_space<vmem>>, vector<16x32xf32>
    tpu.vector_store %arg9[%c0_6, %c0_7], %7 {strides = array<i32>} : memref<16x32xf32, #tpu.memory_space<vmem>>, vector<16x32xf32>,
    %c0_i32_8 = arith.constant 0 : i32
    %9 = arith.cmpi eq, %arg1, %c0_i32_8 : i32
    %10 = arith.extui %9 : i1 to i32
    %c0_i32_9 = arith.constant 0 : i32
    %11 = arith.cmpi ne, %10, %c0_i32_9 : i32
    scf.if %11 {
      %c0_10 = arith.constant 0 : index
      %c0_11 = arith.constant 0 : index
      %12 = vector.load %arg9[%c0_10, %c0_11] : memref<16x32xf32, #tpu.memory_space<vmem>>, vector<16x32xf32>
      %c0_12 = arith.constant 0 : index
      %c0_13 = arith.constant 0 : index
      %13 = vector.load %arg4[%c0_12, %c0_13] : memref<1x32xf32, #tpu.memory_space<vmem>>, vector<1x32xf32>
      %14 = vector.broadcast %13 : vector<1x32xf32> to vector<16x32xf32>
      %15 = arith.addf %12, %14 : vector<16x32xf32>
      %c0_14 = arith.constant 0 : index
      %c0_15 = arith.constant 0 : index
      %16 = vector.load %arg5[%c0_14, %c0_15] : memref<16x32xbf16, #tpu.memory_space<vmem>>, vector<16x32xbf16>
      %17 = arith.extf %16 : vector<16x32xbf16> to vector<16x32xf32>
      %18 = arith.addf %15, %17 : vector<16x32xf32>
      %cst_16 = arith.constant dense<0.000000e+00> : vector<16xf32>
      %19 = vector.multi_reduction <add>, %18, %cst_16 [1] : vector<16x32xf32> to vector<16xf32>
      %20 = vector.shape_cast %19 : vector<16xf32> to vector<16x1xf32>
      %cst_17 = arith.constant 3.200000e+01 : f32
      %21 = vector.broadcast %cst_17 : f32 to vector<16x1xf32>
      %22 = arith.divf %20, %21 : vector<16x1xf32>
      %23 = vector.broadcast %22 : vector<16x1xf32> to vector<16x32xf32>
      %24 = arith.subf %18, %23 : vector<16x32xf32>
      %25 = arith.mulf %24, %24 : vector<16x32xf32>
      %cst_18 = arith.constant dense<0.000000e+00> : vector<16xf32>
      %26 = vector.multi_reduction <add>, %25, %cst_18 [1] : vector<16x32xf32> to vector<16xf32>
      %27 = vector.shape_cast %26 : vector<16xf32> to vector<16x1xf32>
      %cst_19 = arith.constant 3.200000e+01 : f32
      %28 = vector.broadcast %cst_19 : f32 to vector<16x1xf32>
      %29 = arith.divf %27, %28 : vector<16x1xf32>
      %cst_20 = arith.constant 9.99999974E-6 : f32
      %30 = vector.broadcast %cst_20 : f32 to vector<16x1xf32>
      %31 = arith.addf %29, %30 : vector<16x1xf32>
      %32 = math.rsqrt %31 : vector<16x1xf32>
      %33 = vector.broadcast %32 : vector<16x1xf32> to vector<16x32xf32>
      %34 = arith.mulf %24, %33 : vector<16x32xf32>
      %c0_21 = arith.constant 0 : index
      %c0_22 = arith.constant 0 : index
      %35 = vector.load %arg6[%c0_21, %c0_22] : memref<1x32xf32, #tpu.memory_space<vmem>>, vector<1x32xf32>
      %36 = vector.broadcast %35 : vector<1x32xf32> to vector<16x32xf32>
      %37 = arith.mulf %34, %36 : vector<16x32xf32>
      %c0_23 = arith.constant 0 : index
      %c0_24 = arith.constant 0 : index
      %38 = vector.load %arg7[%c0_23, %c0_24] : memref<1x32xf32, #tpu.memory_space<vmem>>, vector<1x32xf32>
      %39 = vector.broadcast %38 : vector<1x32xf32> to vector<16x32xf32>
      %40 = arith.addf %37, %39 : vector<16x32xf32>
      %41 = arith.truncf %40 : vector<16x32xf32> to vector<16x32xbf16>
      %c0_25 = arith.constant 0 : index
      %c0_26 = arith.constant 0 : index
      %42 = vector.load %arg8[%c0_25, %c0_26] : memref<16x32xbf16, #tpu.memory_space<vmem>>, vector<16x32xbf16>
      tpu.vector_store %arg8[%c0_25, %c0_26], %41 {strides = array<i32>} : memref<16x32xbf16, #tpu.memory_space<vmem>>, vector<16x32xbf16>,
    } else {
    }
    return
  }
  func.func @transform_0(%arg0: i32, %arg1: i32) -> (i32, i32) {
    %c0_i32 = arith.constant 0 : i32
    return %arg0, %arg1 : i32, i32
  }
  func.func @transform_1(%arg0: i32, %arg1: i32) -> (i32, i32) {
    %c0_i32 = arith.constant 0 : i32
    %c0_i32_0 = arith.constant 0 : i32
    return %arg1, %c0_i32 : i32, i32
  }
  func.func @transform_2(%arg0: i32, %arg1: i32) -> (i32, i32) {
    %c0_i32 = arith.constant 0 : i32
    %c0_i32_0 = arith.constant 0 : i32
    %c0_i32_1 = arith.constant 0 : i32
    return %c0_i32, %c0_i32_0 : i32, i32
  }
  func.func @transform_3(%arg0: i32, %arg1: i32) -> (i32, i32) {
    %c0_i32 = arith.constant 0 : i32
    %c0_i32_0 = arith.constant 0 : i32
    return %arg0, %c0_i32 : i32, i32
  }
  func.func @transform_4(%arg0: i32, %arg1: i32) -> (i32, i32) {
    %c0_i32 = arith.constant 0 : i32
    %c0_i32_0 = arith.constant 0 : i32
    %c0_i32_1 = arith.constant 0 : i32
    return %c0_i32, %c0_i32_0 : i32, i32
  }
  func.func @transform_5(%arg0: i32, %arg1: i32) -> (i32, i32) {
    %c0_i32 = arith.constant 0 : i32
    %c0_i32_0 = arith.constant 0 : i32
    %c0_i32_1 = arith.constant 0 : i32
    return %c0_i32, %c0_i32_0 : i32, i32
  }
  func.func @transform_6(%arg0: i32, %arg1: i32) -> (i32, i32) {
    %c0_i32 = arith.constant 0 : i32
    %c0_i32_0 = arith.constant 0 : i32
    return %arg0, %c0_i32 : i32, i32
  }
}

module attributes {stable_mosaic.version = 11 : i64} {
  func.func @_ffn_ln_kernel(%arg0: i32, %arg1: memref<16x32xbf16, #tpu.memory_space<vmem>>, %arg2: memref<32x128xbf16, #tpu.memory_space<vmem>>, %arg3: memref<1x128xf32, #tpu.memory_space<vmem>>, %arg4: memref<128x32xbf16, #tpu.memory_space<vmem>>, %arg5: memref<1x32xf32, #tpu.memory_space<vmem>>, %arg6: memref<1x32xf32, #tpu.memory_space<vmem>>, %arg7: memref<1x32xf32, #tpu.memory_space<vmem>>, %arg8: memref<16x32xbf16, #tpu.memory_space<vmem>>) attributes {dimension_semantics = [#tpu.dimension_semantics<parallel>], iteration_bounds = array<i64: 1>, scalar_prefetch = 0 : i64, scratch_operands = 0 : i64, tpu.core_type = #tpu.core_type<tc>, window_params = [{transform_indices = @transform_0, window_bounds = array<i64: 16, 32>}, {pipeline_mode = #tpu.pipeline_mode<synchronous>, transform_indices = @transform_1, window_bounds = array<i64: 32, 128>}, {pipeline_mode = #tpu.pipeline_mode<synchronous>, transform_indices = @transform_2, window_bounds = array<i64: 1, 128>}, {pipeline_mode = #tpu.pipeline_mode<synchronous>, transform_indices = @transform_3, window_bounds = array<i64: 128, 32>}, {pipeline_mode = #tpu.pipeline_mode<synchronous>, transform_indices = @transform_4, window_bounds = array<i64: 1, 32>}, {pipeline_mode = #tpu.pipeline_mode<synchronous>, transform_indices = @transform_5, window_bounds = array<i64: 1, 32>}, {pipeline_mode = #tpu.pipeline_mode<synchronous>, transform_indices = @transform_6, window_bounds = array<i64: 1, 32>}, {transform_indices = @transform_7, window_bounds = array<i64: 16, 32>}]} {
    %c0 = arith.constant 0 : index
    %c0_0 = arith.constant 0 : index
    %0 = vector.load %arg1[%c0, %c0_0] : memref<16x32xbf16, #tpu.memory_space<vmem>>, vector<16x32xbf16>
    %c0_1 = arith.constant 0 : index
    %c0_2 = arith.constant 0 : index
    %1 = vector.load %arg2[%c0_1, %c0_2] : memref<32x128xbf16, #tpu.memory_space<vmem>>, vector<32x128xbf16>
    %cst = arith.constant dense<0.000000e+00> : vector<16x128xf32>
    %2 = tpu.matmul %0, %1, %cst {dimension_numbers = #tpu.dot_dimension_numbers<[1], [0], [0], [1], [0, 0, 1, 1], [], []>} : vector<16x32xbf16>, vector<32x128xbf16>, vector<16x128xf32> -> vector<16x128xf32>
    %c0_3 = arith.constant 0 : index
    %c0_4 = arith.constant 0 : index
    %3 = vector.load %arg3[%c0_3, %c0_4] : memref<1x128xf32, #tpu.memory_space<vmem>>, vector<1x128xf32>
    %4 = vector.broadcast %3 : vector<1x128xf32> to vector<16x128xf32>
    %5 = arith.addf %2, %4 : vector<16x128xf32>
    %cst_5 = arith.constant 0.000000e+00 : f32
    %6 = vector.broadcast %cst_5 : f32 to vector<16x128xf32>
    %7 = arith.maximumf %5, %6 : vector<16x128xf32>
    %8 = arith.truncf %7 : vector<16x128xf32> to vector<16x128xbf16>
    %c0_6 = arith.constant 0 : index
    %c0_7 = arith.constant 0 : index
    %9 = vector.load %arg4[%c0_6, %c0_7] : memref<128x32xbf16, #tpu.memory_space<vmem>>, vector<128x32xbf16>
    %cst_8 = arith.constant dense<0.000000e+00> : vector<16x32xf32>
    %10 = tpu.matmul %8, %9, %cst_8 {dimension_numbers = #tpu.dot_dimension_numbers<[1], [0], [0], [1], [0, 0, 1, 1], [], []>} : vector<16x128xbf16>, vector<128x32xbf16>, vector<16x32xf32> -> vector<16x32xf32>
    %c0_9 = arith.constant 0 : index
    %c0_10 = arith.constant 0 : index
    %11 = vector.load %arg5[%c0_9, %c0_10] : memref<1x32xf32, #tpu.memory_space<vmem>>, vector<1x32xf32>
    %12 = vector.broadcast %11 : vector<1x32xf32> to vector<16x32xf32>
    %13 = arith.addf %10, %12 : vector<16x32xf32>
    %c0_11 = arith.constant 0 : index
    %c0_12 = arith.constant 0 : index
    %14 = vector.load %arg1[%c0_11, %c0_12] : memref<16x32xbf16, #tpu.memory_space<vmem>>, vector<16x32xbf16>
    %15 = arith.extf %14 : vector<16x32xbf16> to vector<16x32xf32>
    %16 = arith.addf %13, %15 : vector<16x32xf32>
    %cst_13 = arith.constant dense<0.000000e+00> : vector<16xf32>
    %17 = vector.multi_reduction <add>, %16, %cst_13 [1] : vector<16x32xf32> to vector<16xf32>
    %18 = vector.shape_cast %17 : vector<16xf32> to vector<16x1xf32>
    %cst_14 = arith.constant 3.200000e+01 : f32
    %19 = vector.broadcast %cst_14 : f32 to vector<16x1xf32>
    %20 = arith.divf %18, %19 : vector<16x1xf32>
    %21 = vector.broadcast %20 : vector<16x1xf32> to vector<16x32xf32>
    %22 = arith.subf %16, %21 : vector<16x32xf32>
    %23 = arith.mulf %22, %22 : vector<16x32xf32>
    %cst_15 = arith.constant dense<0.000000e+00> : vector<16xf32>
    %24 = vector.multi_reduction <add>, %23, %cst_15 [1] : vector<16x32xf32> to vector<16xf32>
    %25 = vector.shape_cast %24 : vector<16xf32> to vector<16x1xf32>
    %cst_16 = arith.constant 3.200000e+01 : f32
    %26 = vector.broadcast %cst_16 : f32 to vector<16x1xf32>
    %27 = arith.divf %25, %26 : vector<16x1xf32>
    %cst_17 = arith.constant 9.99999974E-6 : f32
    %28 = vector.broadcast %cst_17 : f32 to vector<16x1xf32>
    %29 = arith.addf %27, %28 : vector<16x1xf32>
    %30 = math.rsqrt %29 : vector<16x1xf32>
    %31 = vector.broadcast %30 : vector<16x1xf32> to vector<16x32xf32>
    %32 = arith.mulf %22, %31 : vector<16x32xf32>
    %c0_18 = arith.constant 0 : index
    %c0_19 = arith.constant 0 : index
    %33 = vector.load %arg6[%c0_18, %c0_19] : memref<1x32xf32, #tpu.memory_space<vmem>>, vector<1x32xf32>
    %34 = vector.broadcast %33 : vector<1x32xf32> to vector<16x32xf32>
    %35 = arith.mulf %32, %34 : vector<16x32xf32>
    %c0_20 = arith.constant 0 : index
    %c0_21 = arith.constant 0 : index
    %36 = vector.load %arg7[%c0_20, %c0_21] : memref<1x32xf32, #tpu.memory_space<vmem>>, vector<1x32xf32>
    %37 = vector.broadcast %36 : vector<1x32xf32> to vector<16x32xf32>
    %38 = arith.addf %35, %37 : vector<16x32xf32>
    %39 = arith.truncf %38 : vector<16x32xf32> to vector<16x32xbf16>
    %c0_22 = arith.constant 0 : index
    %c0_23 = arith.constant 0 : index
    %40 = vector.load %arg8[%c0_22, %c0_23] : memref<16x32xbf16, #tpu.memory_space<vmem>>, vector<16x32xbf16>
    tpu.vector_store %arg8[%c0_22, %c0_23], %39 {strides = array<i32>} : memref<16x32xbf16, #tpu.memory_space<vmem>>, vector<16x32xbf16>,
    return
  }
  func.func @transform_0(%arg0: i32) -> (i32, i32) {
    %c0_i32 = arith.constant 0 : i32
    %c0_i32_0 = arith.constant 0 : i32
    return %arg0, %c0_i32 : i32, i32
  }
  func.func @transform_1(%arg0: i32) -> (i32, i32) {
    %c0_i32 = arith.constant 0 : i32
    %c0_i32_0 = arith.constant 0 : i32
    %c0_i32_1 = arith.constant 0 : i32
    return %c0_i32, %c0_i32_0 : i32, i32
  }
  func.func @transform_2(%arg0: i32) -> (i32, i32) {
    %c0_i32 = arith.constant 0 : i32
    %c0_i32_0 = arith.constant 0 : i32
    %c0_i32_1 = arith.constant 0 : i32
    return %c0_i32, %c0_i32_0 : i32, i32
  }
  func.func @transform_3(%arg0: i32) -> (i32, i32) {
    %c0_i32 = arith.constant 0 : i32
    %c0_i32_0 = arith.constant 0 : i32
    %c0_i32_1 = arith.constant 0 : i32
    return %c0_i32, %c0_i32_0 : i32, i32
  }
  func.func @transform_4(%arg0: i32) -> (i32, i32) {
    %c0_i32 = arith.constant 0 : i32
    %c0_i32_0 = arith.constant 0 : i32
    %c0_i32_1 = arith.constant 0 : i32
    return %c0_i32, %c0_i32_0 : i32, i32
  }
  func.func @transform_5(%arg0: i32) -> (i32, i32) {
    %c0_i32 = arith.constant 0 : i32
    %c0_i32_0 = arith.constant 0 : i32
    %c0_i32_1 = arith.constant 0 : i32
    return %c0_i32, %c0_i32_0 : i32, i32
  }
  func.func @transform_6(%arg0: i32) -> (i32, i32) {
    %c0_i32 = arith.constant 0 : i32
    %c0_i32_0 = arith.constant 0 : i32
    %c0_i32_1 = arith.constant 0 : i32
    return %c0_i32, %c0_i32_0 : i32, i32
  }
  func.func @transform_7(%arg0: i32) -> (i32, i32) {
    %c0_i32 = arith.constant 0 : i32
    %c0_i32_0 = arith.constant 0 : i32
    return %arg0, %c0_i32 : i32, i32
  }
}

</mosaic_0001>

<llo_original>
// kernel: decoder_layer.11
$region0: #{decoder_layer.11}
  #allocation0 [shape = 'u32[]', space=smem, size = 0x4, offset = 0x4, fixed_abs, tag = 'smem constant byte address 0x4 - core index']
  #allocation1 [shape = 'u32[144,128]{1,0:T(1,128)}', space=vmem, size = 0x12000, scoped, tag = 'internal scratch']
  #allocation2 [shape = 'f32[8,1]{1,0:T(8,128)}', space=vmem, size = 0x1000, scoped, tag = 'scratch operand']
  #allocation3 [shape = 'f32[8,1]{1,0:T(8,128)}', space=vmem, size = 0x1000, scoped, tag = 'scratch operand']
  #allocation4 [shape = 'f32[8,8]{1,0:T(8,128)}', space=vmem, size = 0x1000, scoped, tag = 'scratch operand']
  %s0 = inlined_call_operand.vmem [shape: bf16[2,4,8,8], index: 0, kind: input, shape index: {}]
  %s1 = inlined_call_operand.vmem [shape: bf16[2,4,8,8], index: 1, kind: input, shape index: {}]
  %s2 = inlined_call_operand.vmem [shape: bf16[2,4,8,8], index: 2, kind: input, shape index: {}]
  %s3 = inlined_call_operand.vmem [shape: bf16[2,4,8,8], index: 3, kind: output, shape index: {}]
  %s4 = sld [smem:[#allocation0]]
  $region53: #{decoder_layer.11} parent=0
    _
  %s6 = ssub.s32 1, %s4
  %s7 = scalar_select 0, %s6, %s4
  loop: start=0, step=1, limit=10
  $region2: #{decoder_layer.11} parent=0 // loop_pre_header
    _
  $region3: #{decoder_layer.11} parent=0 // loop_header
    %s9 = sphi 0, %s13
    %p10 = scmp.ge.s32.totalorder %s9, 10
    %s16 = sphi 0, %s42
    %s17 = sphi 0, %s38
    %s18 = sphi 0, %s34
    %s19 = sphi 0, %s30
    %s20 = sphi 0, %s16
    %s21 = sphi 0, %s17
    %s22 = sphi 0, %s18
    %s23 = sphi 0, %s19
    %s24 = sphi 0, %s20
    %s25 = sphi 0, %s21
    %s26 = sphi 0, %s22
    %s27 = sphi 0, %s23
    %s49 = sphi 0, %s51
    %s52 = sphi 0, %s49
    %s53 = sphi 0, %s52
    %s69 = sphi 0, %s53
    %s79 = sphi 0, %s81
    %s82 = sphi 0, %s79
    %s83 = sphi 0, %s82
    %s99 = sphi 0, %s83
    %s109 = sphi 0, %s111
    %s112 = sphi 0, %s109
    %s113 = sphi 0, %s112
    %s129 = sphi 0, %s113
    %s139 = sphi 0, %s141
    %s142 = sphi 0, %s139
    %s143 = sphi 0, %s142
    %s159 = sphi 0, %s143
  $region4: #{decoder_layer.11} parent=0 // loop_header_branch
    %12 = sbr.rel (%p10) target = $region8
  $region5: #{decoder_layer.11} parent=0 // loop_body
    %s14 = ssub.s32 %s9, 1
    %s15 = ssub.s32 %s9, 2
    %s28 = sadd.s32 1, %s19
    %p29 = scmp.ge.s32.totalorder %s28, 1
    %s30 = scalar_select %p29, 0, %s28
    %s31 = sadd.s32 1, %s18
    %s32 = scalar_select %p29, %s31, %s18
    %p33 = scmp.ge.s32.totalorder %s32, 1
    %s34 = scalar_select %p33, 0, %s32
    %s35 = sadd.s32 1, %s17
    %s36 = scalar_select %p33, %s35, %s17
    %p37 = scmp.ge.s32.totalorder %s36, 4
    %s38 = scalar_select %p37, 0, %s36
    %s39 = sadd.s32 1, %s16
    %s40 = scalar_select %p37, %s39, %s16
    %p41 = scmp.ge.s32.totalorder %s40, 2
    %s42 = scalar_select %p41, 0, %s40
    %s43 = ssub.s32 %s16, %s42
    %s44 = ssub.s32 %s17, %s38
    %s45 = sor.u32 %s43, %s44
    %s46 = ssub.s32 %s18, %s34
    %s47 = sor.u32 %s45, %s46
    %p48 = scmp.eq.s32.totalorder %s47, 0
    %s50 = sadd.s32 %s49, 1
    %s51 = scalar_select %p48, %s49, %s50
    %p54 = pneg %p48
    %p55 = scmp.eq.s32.totalorder %s9, 7
    %p56 = por %p54, %p55
    %p57 = scmp.ne.s32.totalorder %s49, %s52
    %p58 = scmp.eq.s32.totalorder %s9, 0
    %p59 = por %p57, %p58
    %p60 = scmp.ne.s32.totalorder %s49, %s52
    %p61 = scmp.eq.s32.totalorder %s14, 7
    %p62 = por %p60, %p61
    %p63 = scmp.ne.s32.totalorder %s52, %s53
    %p64 = scmp.eq.s32.totalorder %s14, 0
    %p65 = por %p63, %p64
    %p66 = scmp.ne.s32.totalorder %s52, %s53
    %p67 = scmp.eq.s32.totalorder %s15, 7
    %p68 = por %p66, %p67
    %p70 = scmp.ne.s32.totalorder %s53, %s69
    %p71 = scmp.eq.s32.totalorder %s15, 0
    %p72 = por %p70, %p71
    %s73 = ssub.s32 %s16, %s42
    %s74 = ssub.s32 %s17, %s38
    %s75 = sor.u32 %s73, %s74
    %s76 = ssub.s32 %s19, %s30
    %s77 = sor.u32 %s75, %s76
    %p78 = scmp.eq.s32.totalorder %s77, 0
    %s80 = sadd.s32 %s79, 1
    %s81 = scalar_select %p78, %s79, %s80
    %p84 = pneg %p78
    %p85 = scmp.eq.s32.totalorder %s9, 7
    %p86 = por %p84, %p85
    %p87 = scmp.ne.s32.totalorder %s79, %s82
    %p88 = scmp.eq.s32.totalorder %s9, 0
    %p89 = por %p87, %p88
    %p90 = scmp.ne.s32.totalorder %s79, %s82
    %p91 = scmp.eq.s32.totalorder %s14, 7
    %p92 = por %p90, %p91
    %p93 = scmp.ne.s32.totalorder %s82, %s83
    %p94 = scmp.eq.s32.totalorder %s14, 0
    %p95 = por %p93, %p94
    %p96 = scmp.ne.s32.totalorder %s82, %s83
    %p97 = scmp.eq.s32.totalorder %s15, 7
    %p98 = por %p96, %p97
    %p100 = scmp.ne.s32.totalorder %s83, %s99
    %p101 = scmp.eq.s32.totalorder %s15, 0
    %p102 = por %p100, %p101
    %s103 = ssub.s32 %s16, %s42
    %s104 = ssub.s32 %s17, %s38
    %s105 = sor.u32 %s103, %s104
    %s106 = ssub.s32 %s19, %s30
    %s107 = sor.u32 %s105, %s106
    %p108 = scmp.eq.s32.totalorder %s107, 0
    %s110 = sadd.s32 %s109, 1
    %s111 = scalar_select %p108, %s109, %s110
    %p114 = pneg %p108
    %p115 = scmp.eq.s32.totalorder %s9, 7
    %p116 = por %p114, %p115
    %p117 = scmp.ne.s32.totalorder %s109, %s112
    %p118 = scmp.eq.s32.totalorder %s9, 0
    %p119 = por %p117, %p118
    %p120 = scmp.ne.s32.totalorder %s109, %s112
    %p121 = scmp.eq.s32.totalorder %s14, 7
    %p122 = por %p120, %p121
    %p123 = scmp.ne.s32.totalorder %s112, %s113
    %p124 = scmp.eq.s32.totalorder %s14, 0
    %p125 = por %p123, %p124
    %p126 = scmp.ne.s32.totalorder %s112, %s113
    %p127 = scmp.eq.s32.totalorder %s15, 7
    %p128 = por %p126, %p127
    %p130 = scmp.ne.s32.totalorder %s113, %s129
    %p131 = scmp.eq.s32.totalorder %s15, 0
    %p132 = por %p130, %p131
    %s133 = ssub.s32 %s16, %s42
    %s134 = ssub.s32 %s17, %s38
    %s135 = sor.u32 %s133, %s134
    %s136 = ssub.s32 %s18, %s34
    %s137 = sor.u32 %s135, %s136
    %p138 = scmp.eq.s32.totalorder %s137, 0
    %s140 = sadd.s32 %s139, 1
    %s141 = scalar_select %p138, %s139, %s140
    %p144 = pneg %p138
    %p145 = scmp.eq.s32.totalorder %s9, 7
    %p146 = por %p144, %p145
    %p147 = scmp.ne.s32.totalorder %s139, %s142
    %p148 = scmp.eq.s32.totalorder %s9, 0
    %p149 = por %p147, %p148
    %p150 = scmp.ne.s32.totalorder %s139, %s142
    %p151 = scmp.eq.s32.totalorder %s14, 7
    %p152 = por %p150, %p151
    %p153 = scmp.ne.s32.totalorder %s142, %s143
    %p154 = scmp.eq.s32.totalorder %s14, 0
    %p155 = por %p153, %p154
    %p156 = scmp.ne.s32.totalorder %s142, %s143
    %p157 = scmp.eq.s32.totalorder %s15, 7
    %p158 = por %p156, %p157
    %p160 = scmp.ne.s32.totalorder %s143, %s159
    %p161 = scmp.eq.s32.totalorder %s15, 0
    %p162 = por %p160, %p161
    %p163 = scmp.le.s32.totalorder 1, %s9
    %p164 = scmp.lt.s32.totalorder %s9, 9
    %p165 = pnand %p163, %p164
    %p166 = pneg %p165
    // Predicated region
    $region9: #{decoder_layer.11} parent=5 // pred_check
      _
    $region10: #{decoder_layer.11} parent=5 // pred_check_branch
      %168 = sbr.rel (%p165) target = $region12
    $region11: #{decoder_layer.11} parent=5 // pred_region
      %s169 = ssub.s32 %s9, 1
    $region12: #{decoder_layer.11} parent=5 // pred_fallthru
      _
    %p170 = scmp.lt.s32.totalorder %s9, 8
    // Predicated region
    $region13: #{decoder_layer.11} parent=5 // pred_check
      %p171 = pneg %p170
    $region14: #{decoder_layer.11} parent=5 // pred_check_branch
      %173 = sbr.rel (%p171) target = $region16
    $region15: #{decoder_layer.11} parent=5 // pred_region
      // Predicated region
      $region17: #{decoder_layer.11} parent=15 // pred_check
        %p174 = pneg %p59
      $region18: #{decoder_layer.11} parent=15 // pred_check_branch
        %176 = sbr.rel (%p174) target = $region20
      $region19: #{decoder_layer.11} parent=15 // pred_region
        %p177 = scmp.lt.s32.totalorder %s16, 1
        %s178 = scalar_select %p177, %s16, 1
        %p179 = scmp.lt.s32.totalorder %s17, 3
        %s180 = scalar_select %p179, %s17, 3
        %p181 = scmp.lt.s32.totalorder %s18, 0
        %s182 = scalar_select %p181, %s18, 0
        %s183 = sadd.s32 %s182, %s180
        %s184 = smul.addr %s178, 4
        %s185 = sadd.s32 %s183, %s184
        %s186 = smul.addr %s185, 4
        %s187 = scalar_lea.vmem %s0, %s186
      $region20: #{decoder_layer.11} parent=15 // pred_fallthru
        _
      // Predicated region
      $region21: #{decoder_layer.11} parent=15 // pred_check
        %p188 = pneg %p89
      $region22: #{decoder_layer.11} parent=15 // pred_check_branch
        %190 = sbr.rel (%p188) target = $region24
      $region23: #{decoder_layer.11} parent=15 // pred_region
        %p191 = scmp.lt.s32.totalorder %s16, 1
        %s192 = scalar_select %p191, %s16, 1
        %p193 = scmp.lt.s32.totalorder %s17, 3
        %s194 = scalar_select %p193, %s17, 3
        %p195 = scmp.lt.s32.totalorder %s19, 0
        %s196 = scalar_select %p195, %s19, 0
        %s197 = sadd.s32 %s196, %s194
        %s198 = smul.addr %s192, 4
        %s199 = sadd.s32 %s197, %s198
        %s200 = smul.addr %s199, 4
        %s201 = scalar_lea.vmem %s1, %s200
      $region24: #{decoder_layer.11} parent=15 // pred_fallthru
        _
      // Predicated region
      $region25: #{decoder_layer.11} parent=15 // pred_check
        %p202 = pneg %p119
      $region26: #{decoder_layer.11} parent=15 // pred_check_branch
        %204 = sbr.rel (%p202) target = $region28
      $region27: #{decoder_layer.11} parent=15 // pred_region
        %p205 = scmp.lt.s32.totalorder %s16, 1
        %s206 = scalar_select %p205, %s16, 1
        %p207 = scmp.lt.s32.totalorder %s17, 3
        %s208 = scalar_select %p207, %s17, 3
        %p209 = scmp.lt.s32.totalorder %s19, 0
        %s210 = scalar_select %p209, %s19, 0
        %s211 = sadd.s32 %s210, %s208
        %s212 = smul.addr %s206, 4
        %s213 = sadd.s32 %s211, %s212
        %s214 = smul.addr %s213, 4
        %s215 = scalar_lea.vmem %s2, %s214
      $region28: #{decoder_layer.11} parent=15 // pred_fallthru
        _
    $region16: #{decoder_layer.11} parent=5 // pred_fallthru
      _
    %p216 = scmp.le.s32.totalorder 1, %s9
    %p217 = scmp.lt.s32.totalorder %s9, 9
    %p218 = pnand %p216, %p217
    %p219 = pneg %p218
    // Predicated region
    $region29: #{decoder_layer.11} parent=5 // pred_check
      _
    $region30: #{decoder_layer.11} parent=5 // pred_check_branch
      %221 = sbr.rel (%p218) target = $region32
    $region31: #{decoder_layer.11} parent=5 // pred_region
      %s222 = ssub.s32 %s9, 1
      %p223 = scmp.lt.s32.totalorder %s20, 1
      %s224 = scalar_select %p223, %s20, 1
      %p225 = scmp.lt.s32.totalorder %s21, 3
      %s226 = scalar_select %p225, %s21, 3
      %p227 = scmp.lt.s32.totalorder %s22, 0
      %s228 = scalar_select %p227, %s22, 0
      %s229 = sadd.s32 %s228, %s226
      %s230 = smul.addr %s224, 4
      %s231 = sadd.s32 %s229, %s230
      %s232 = smul.addr %s231, 4
      %s233 = scalar_lea.vmem %s0, %s232
      %p234 = pneg %p65
      %p235 = pneg %p62
      %p236 = scmp.lt.s32.totalorder %s20, 1
      %s237 = scalar_select %p236, %s20, 1
      %p238 = scmp.lt.s32.totalorder %s21, 3
      %s239 = scalar_select %p238, %s21, 3
      %p240 = scmp.lt.s32.totalorder %s23, 0
      %s241 = scalar_select %p240, %s23, 0
      %s242 = sadd.s32 %s241, %s239
      %s243 = smul.addr %s237, 4
      %s244 = sadd.s32 %s242, %s243
      %s245 = smul.addr %s244, 4
      %s246 = scalar_lea.vmem %s1, %s245
      %p247 = pneg %p95
      %p248 = pneg %p92
      %p249 = scmp.lt.s32.totalorder %s20, 1
      %s250 = scalar_select %p249, %s20, 1
      %p251 = scmp.lt.s32.totalorder %s21, 3
      %s252 = scalar_select %p251, %s21, 3
      %p253 = scmp.lt.s32.totalorder %s23, 0
      %s254 = scalar_select %p253, %s23, 0
      %s255 = sadd.s32 %s254, %s252
      %s256 = smul.addr %s250, 4
      %s257 = sadd.s32 %s255, %s256
      %s258 = smul.addr %s257, 4
      %s259 = scalar_lea.vmem %s2, %s258
      %p260 = pneg %p125
      %p261 = pneg %p122
      %p262 = pneg %p155
      %p263 = pneg %p152
      %p264 = scmp.lt.s32.totalorder %s20, 1
      %s265 = scalar_select %p264, %s20, 1
      %p266 = scmp.lt.s32.totalorder %s21, 3
      %s267 = scalar_select %p266, %s21, 3
      %p268 = scmp.lt.s32.totalorder %s22, 0
      %s269 = scalar_select %p268, %s22, 0
      %s270 = sadd.s32 %s269, %s267
      %s271 = smul.addr %s265, 4
      %s272 = sadd.s32 %s270, %s271
      %s273 = smul.addr %s272, 4
      %s274 = scalar_lea.vmem %s3, %s273
      %p275 = scmp.lt.s32.totalorder %s20, 1
      %s276 = scalar_select %p275, %s20, 1
      %p277 = scmp.lt.s32.totalorder %s21, 3
      %s278 = scalar_select %p277, %s21, 3
      %p279 = scmp.lt.s32.totalorder %s22, 0
      %s280 = scalar_select %p279, %s22, 0
      %s281 = sadd.s32 %s280, %s278
      %s282 = smul.addr %s276, 4
      %s283 = sadd.s32 %s281, %s282
      %s284 = smul.addr %s283, 4
      %s285 = scalar_lea.vmem %s0, %s284
      %p286 = scmp.lt.s32.totalorder %s20, 1
      %s287 = scalar_select %p286, %s20, 1
      %p288 = scmp.lt.s32.totalorder %s21, 3
      %s289 = scalar_select %p288, %s21, 3
      %p290 = scmp.lt.s32.totalorder %s23, 0
      %s291 = scalar_select %p290, %s23, 0
      %s292 = sadd.s32 %s291, %s289
      %s293 = smul.addr %s287, 4
      %s294 = sadd.s32 %s292, %s293
      %s295 = smul.addr %s294, 4
      %s296 = scalar_lea.vmem %s1, %s295
      %p297 = scmp.lt.s32.totalorder %s20, 1
      %s298 = scalar_select %p297, %s20, 1
      %p299 = scmp.lt.s32.totalorder %s21, 3
      %s300 = scalar_select %p299, %s21, 3
      %p301 = scmp.lt.s32.totalorder %s23, 0
      %s302 = scalar_select %p301, %s23, 0
      %s303 = sadd.s32 %s302, %s300
      %s304 = smul.addr %s298, 4
      %s305 = sadd.s32 %s303, %s304
      %s306 = smul.addr %s305, 4
      %s307 = scalar_lea.vmem %s2, %s306
      %p308 = scmp.lt.s32.totalorder %s20, 1
      %s309 = scalar_select %p308, %s20, 1
      %p310 = scmp.lt.s32.totalorder %s21, 3
      %s311 = scalar_select %p310, %s21, 3
      %p312 = scmp.lt.s32.totalorder %s22, 0
      %s313 = scalar_select %p312, %s22, 0
      %s314 = sadd.s32 %s313, %s311
      %s315 = smul.addr %s309, 4
      %s316 = sadd.s32 %s314, %s315
      %s317 = smul.addr %s316, 4
      %s318 = scalar_lea.vmem %s3, %s317
      %p320 = scmp.eq.s32.totalorder %s23, 0
      // Predicated region
      $region33: #{decoder_layer.11} parent=31 // pred_check
        %p321 = pneg %p320
      $region34: #{decoder_layer.11} parent=31 // pred_check_branch
        %323 = sbr.rel (%p321) target = $region36
      $region35: #{decoder_layer.11} parent=31 // pred_region
        %vm324 = vcmask 7168
        %325 = vst.msk [vmem:[#allocation2] sm:$0xff] %vm324, -inf
        %326 = vst.msk [vmem:[#allocation3] sm:$0xff] %vm324, 0.0
        %vm327 = vcmask 64512
        %328 = vst.msk [vmem:[#allocation4] sm:$0xff] %vm327, 0.0
      $region36: #{decoder_layer.11} parent=31 // pred_fallthru
        _
      %v329 = vld [vmem:[%s285] sm:$0xf]
      %v330 = vunpack.c.l.bf16 %v329
      %v331 = vmul.f32 %v330, 0.35355338
      %v332 = vpack.c.bf16 %v331, %v331
      %v333 = vld [vmem:[%s296] sm:$0xf]
      %vm334 = vcmask 64512
      %v336 = vsel %vm334, %v332, 0
      %v339 = vsel %vm334, %v333, 0
      %341 = vmatprep.subr.bf16.mxu0 0
      %342 = vmatpush1.bf16.xpose.msra.mxu0 0
      %343 = vmatprep.subr.bf16.mxu0 0
      %344 = vmatpush1.bf16.xpose.msra.mxu0 0
      %345 = vmatprep.subr.bf16.mxu0 0
      %346 = vmatpush1.bf16.xpose.msra.mxu0 0
      %347 = vmatprep.subr.bf16.mxu0 0
      %348 = vmatpush1.bf16.xpose.msra.mxu0 0
      %349 = vmatprep.subr.bf16.mxu0 0
      %350 = vmatpush1.bf16.xpose.msra.mxu0 0
      %351 = vmatprep.subr.bf16.mxu0 0
      %352 = vmatpush1.bf16.xpose.msra.mxu0 0
      %353 = vmatprep.subr.bf16.mxu0 0
      %354 = vmatpush1.bf16.xpose.msra.mxu0 0
      %355 = vmatprep.subr.bf16.mxu0 0
      %356 = vmatpush1.bf16.xpose.msra.mxu0 %v339
      %357 = vmatprep.subr.bf16.mxu0 0
      %358 = vmatpush2.bf16.xpose.msra.mxu0 0
      %359 = vmatprep.subr.bf16.mxu0 0
      %360 = vmatpush2.bf16.xpose.msra.mxu0 0
      %361 = vmatprep.subr.bf16.mxu0 0
      %362 = vmatpush2.bf16.xpose.msra.mxu0 0
      %363 = vmatprep.subr.bf16.mxu0 0
      %364 = vmatpush2.bf16.xpose.msra.mxu0 0
      %365 = vmatprep.subr.bf16.mxu0 0
      %366 = vmatpush2.bf16.xpose.msra.mxu0 0
      %367 = vmatprep.subr.bf16.mxu0 0
      %368 = vmatpush2.bf16.xpose.msra.mxu0 0
      %369 = vmatprep.subr.bf16.mxu0 0
      %370 = vmatpush2.bf16.xpose.msra.mxu0 0
      %371 = vmatprep.subr.bf16.mxu0 0
      %372 = vmatpush2.bf16.xpose.msra.mxu0 0
      %373 = vmatprep.mubr.bf16.mxu0 0
      %374 = vmatmul.mubr.bf16.gmra.mxu0 %v336
      %v375 = vpop.f32.mrf.mxu0
      %v376 = vadd.f32 0.0, %v375
      %v377 = vpop.f32.mrf.mxu0
      %v378 = vpop.f32.mrf.mxu0
      %v379 = vpop.f32.mrf.mxu0
      %380 = vdwg.mxu0
      %v381 = vld [vmem:[#allocation2] sm:$0xff]
      %v382 = vsel %vm334, %v376, -inf
      %383 = vmax.xlane.f32.xlu0 %v382
      %v384 = vpop.xlane.xlu0 %383
      %v385 = vmax.f32 %v381, %v384
      %v386 = vsub.f32 %v381, %v385
      %v387 = vmul.f32 %v386, 1.442695
      %v388 = vpow.pop %v387
      %390 = vset.pattern.permute.xlu0 0
      %391 = vperm.xlu0 %390, %v385
      %v392 = vpop.permute.xlu0 %391
      %v394 = vsub.f32 %v376, %v392
      %v395 = vmul.f32 %v394, 1.442695
      %v396 = vpow.pop %v395
      %v397 = vld [vmem:[#allocation3] sm:$0xff]
      %v398 = vmul.f32 %v388, %v397
      %v399 = vsel %vm334, %v396, 0.0
      %400 = vadd.xlane.f32.xlu0 %v399
      %v401 = vpop.xlane.xlu0 %400
      %v402 = vadd.f32 %v398, %v401
      %vm403 = vcmask 7168
      %404 = vst.msk [vmem:[#allocation3] sm:$0xff] %vm403, %v402
      %v405 = vld [vmem:[#allocation4] sm:$0xff]
      %407 = vset.pattern.permute.xlu0 0
      %408 = vperm.xlu0 %407, %v388
      %v409 = vpop.permute.xlu0 %408
      %v411 = vmul.f32 %v409, %v405
      %v412 = vpack.c.bf16 %v396, %v396
      %v413 = vld [vmem:[%s307] sm:$0xf]
      %v415 = vsel %vm334, %v412, 0
      %vm417 = vcmask 1043456
      %v419 = vsel %vm417, %v413, 0
      %421 = vmatprep.subr.bf16.mxu0 0
      %422 = vmatpush1.bf16.msra.mxu0 0
      %423 = vmatprep.subr.bf16.mxu0 0
      %424 = vmatpush1.bf16.msra.mxu0 0
      %425 = vmatprep.subr.bf16.mxu0 0
      %426 = vmatpush1.bf16.msra.mxu0 0
      %427 = vmatprep.subr.bf16.mxu0 0
      %428 = vmatpush1.bf16.msra.mxu0 0
      %429 = vmatprep.subr.bf16.mxu0 0
      %430 = vmatpush1.bf16.msra.mxu0 0
      %431 = vmatprep.subr.bf16.mxu0 0
      %432 = vmatpush1.bf16.msra.mxu0 0
      %433 = vmatprep.subr.bf16.mxu0 0
      %434 = vmatpush1.bf16.msra.mxu0 0
      %435 = vmatprep.subr.bf16.mxu0 0
      %436 = vmatpush1.bf16.msra.mxu0 %v419
      %437 = vmatprep.subr.bf16.mxu0 0
      %438 = vmatpush2.bf16.msra.mxu0 0
      %439 = vmatprep.subr.bf16.mxu0 0
      %440 = vmatpush2.bf16.msra.mxu0 0
      %441 = vmatprep.subr.bf16.mxu0 0
      %442 = vmatpush2.bf16.msra.mxu0 0
      %443 = vmatprep.subr.bf16.mxu0 0
      %444 = vmatpush2.bf16.msra.mxu0 0
      %445 = vmatprep.subr.bf16.mxu0 0
      %446 = vmatpush2.bf16.msra.mxu0 0
      %447 = vmatprep.subr.bf16.mxu0 0
      %448 = vmatpush2.bf16.msra.mxu0 0
      %449 = vmatprep.subr.bf16.mxu0 0
      %450 = vmatpush2.bf16.msra.mxu0 0
      %451 = vmatprep.subr.bf16.mxu0 0
      %452 = vmatpush2.bf16.msra.mxu0 0
      %453 = vmatprep.mubr.bf16.mxu0 0
      %454 = vmatmul.mubr.bf16.gmra.mxu0 %v415
      %v455 = vpop.f32.mrf.mxu0
      %v456 = vadd.f32 0.0, %v455
      %v457 = vpop.f32.mrf.mxu0
      %v458 = vpop.f32.mrf.mxu0
      %v459 = vpop.f32.mrf.mxu0
      %460 = vdwg.mxu0
      %v461 = vadd.f32 %v411, %v456
      %462 = vst.msk [vmem:[#allocation4] sm:$0xff] %vm334, %v461
      %463 = vst.msk [vmem:[#allocation2] sm:$0xff] %vm403, %v385
      // Predicated region
      $region37: #{decoder_layer.11} parent=31 // pred_check
        %p464 = pneg %p320
      $region38: #{decoder_layer.11} parent=31 // pred_check_branch
        %466 = sbr.rel (%p464) target = $region40
      $region39: #{decoder_layer.11} parent=31 // pred_region
        %v467 = vld [vmem:[#allocation4] sm:$0xff]
        %v468 = vld [vmem:[#allocation3] sm:$0xff]
        %v469 = vrcp.pop %v468
        %471 = vset.pattern.permute.xlu0 0
        %472 = vperm.xlu0 %471, %v469
        %v473 = vpop.permute.xlu0 %472
        %v475 = vmul.f32 %v467, %v473
        %v476 = vpack.c.bf16 %v475, %v475
        %vm477 = vcmask 60416
        %478 = vst.msk [vmem:[%s318] sm:$0xf] %vm477, %v476
      $region40: #{decoder_layer.11} parent=31 // pred_fallthru
        _
      %p479 = scmp.lt.s32.totalorder %s20, 1
      %s480 = scalar_select %p479, %s20, 1
      %p481 = scmp.lt.s32.totalorder %s21, 3
      %s482 = scalar_select %p481, %s21, 3
      %p483 = scmp.lt.s32.totalorder %s22, 0
      %s484 = scalar_select %p483, %s22, 0
      %s485 = sadd.s32 %s484, %s482
      %s486 = smul.addr %s480, 4
      %s487 = sadd.s32 %s485, %s486
      %s488 = smul.addr %s487, 4
      %s489 = scalar_lea.vmem %s3, %s488
      // Predicated region
      $region41: #{decoder_layer.11} parent=31 // pred_check
        %p490 = pneg %p152
      $region42: #{decoder_layer.11} parent=31 // pred_check_branch
        %492 = sbr.rel (%p490) target = $region44
      $region43: #{decoder_layer.11} parent=31 // pred_region
        _
      $region44: #{decoder_layer.11} parent=31 // pred_fallthru
        _
    $region32: #{decoder_layer.11} parent=5 // pred_fallthru
      _
    %p493 = scmp.le.s32.totalorder 2, %s9
    // Predicated region
    $region45: #{decoder_layer.11} parent=5 // pred_check
      %p494 = pneg %p493
    $region46: #{decoder_layer.11} parent=5 // pred_check_branch
      %496 = sbr.rel (%p494) target = $region48
    $region47: #{decoder_layer.11} parent=5 // pred_region
      %s497 = ssub.s32 %s9, 2
      // Predicated region
      $region49: #{decoder_layer.11} parent=47 // pred_check
        %p498 = pneg %p158
      $region50: #{decoder_layer.11} parent=47 // pred_check_branch
        %500 = sbr.rel (%p498) target = $region52
      $region51: #{decoder_layer.11} parent=47 // pred_region
        %p501 = scmp.lt.s32.totalorder %s24, 1
        %s502 = scalar_select %p501, %s24, 1
        %p503 = scmp.lt.s32.totalorder %s25, 3
        %s504 = scalar_select %p503, %s25, 3
        %p505 = scmp.lt.s32.totalorder %s26, 0
        %s506 = scalar_select %p505, %s26, 0
        %s507 = sadd.s32 %s506, %s504
        %s508 = smul.addr %s502, 4
        %s509 = sadd.s32 %s507, %s508
        %s510 = smul.addr %s509, 4
        %s511 = scalar_lea.vmem %s3, %s510
      $region52: #{decoder_layer.11} parent=47 // pred_fallthru
        _
    $region48: #{decoder_layer.11} parent=5 // pred_fallthru
      _
  $region6: #{decoder_layer.11} parent=0 // loop_footer
    %s13 = sadd.s32 1, %s9
  $region7: #{decoder_layer.11} parent=0 // loop_footer_branch
    %8 = sbr.rel target = $region3
  $region8: #{decoder_layer.11} parent=0 // loop_exit
    _

// kernel: decoder_layer.10
$region0: #{decoder_layer.10}
  #allocation0 [shape = 'u32[]', space=smem, size = 0x4, offset = 0x4, fixed_abs, tag = 'smem constant byte address 0x4 - core index']
  #allocation1 [shape = 'u32[144,128]{1,0:T(1,128)}', space=vmem, size = 0x12000, scoped, tag = 'internal scratch']
  #allocation2 [shape = 'f32[16,64]{1,0:T(8,128)}', space=vmem, size = 0x2000, scoped, tag = 'scratch operand']
  %s0 = inlined_call_operand.vmem [shape: bf16[16,32], index: 0, kind: input, shape index: {}]
  %s1 = inlined_call_operand.vmem [shape: bf16[32,64], index: 1, kind: input, shape index: {}]
  %s2 = inlined_call_operand.vmem [shape: f32[1,64], index: 2, kind: input, shape index: {}]
  %s3 = inlined_call_operand.vmem [shape: bf16[16,64], index: 3, kind: output, shape index: {}]
  %s4 = sld [smem:[#allocation0]]
  $region30: #{decoder_layer.10} parent=0
    _
  %s6 = ssub.s32 1, %s4
  %s7 = scalar_select 0, %s6, %s4
  // Predicated region
  $region2: #{decoder_layer.10} parent=0 // pred_check
    _
  $region3: #{decoder_layer.10} parent=0 // pred_check_branch
    %9 = sbr.rel (0) target = $region5
  $region4: #{decoder_layer.10} parent=0 // pred_region
    _
  $region5: #{decoder_layer.10} parent=0 // pred_fallthru
    _
  // Predicated region
  $region6: #{decoder_layer.10} parent=0 // pred_check
    _
  $region7: #{decoder_layer.10} parent=0 // pred_check_branch
    %11 = sbr.rel (0) target = $region9
  $region8: #{decoder_layer.10} parent=0 // pred_region
    _
  $region9: #{decoder_layer.10} parent=0 // pred_fallthru
    _
  // Predicated region
  $region10: #{decoder_layer.10} parent=0 // pred_check
    _
  $region11: #{decoder_layer.10} parent=0 // pred_check_branch
    %13 = sbr.rel (0) target = $region13
  $region12: #{decoder_layer.10} parent=0 // pred_region
    _
  $region13: #{decoder_layer.10} parent=0 // pred_fallthru
    _
  %p15 = scmp.eq.s32.totalorder 0, 0
  // Predicated region
  $region14: #{decoder_layer.10} parent=0 // pred_check
    %p16 = pneg %p15
  $region15: #{decoder_layer.10} parent=0 // pred_check_branch
    %18 = sbr.rel (%p16) target = $region17
  $region16: #{decoder_layer.10} parent=0 // pred_region
    %vm19 = vcmask 523264
    %20 = vst.msk [vmem:[#allocation2] sm:$0xff] %vm19, 0.0
    %21 = vst.msk [vmem:[#allocation2 + $0x8] sm:$0xff] %vm19, 0.0
  $region17: #{decoder_layer.10} parent=0 // pred_fallthru
    _
  %v22 = vld [vmem:[#allocation2] sm:$0xff]
  %v23 = vld [vmem:[#allocation2 + $0x8] sm:$0xff]
  %v24 = vld [vmem:[%s0] sm:$0xf]
  %v25 = vld [vmem:[%s0 + $0x4] sm:$0xf]
  %v26 = vld [vmem:[%s1] sm:$0xf]
  %v27 = vld [vmem:[%s1 + $0x4] sm:$0xf]
  %v28 = vld [vmem:[%s1 + $0x8] sm:$0xf]
  %v29 = vld [vmem:[%s1 + $0xc] sm:$0xf]
  %v32 = vunpack.c.l.b16 %v24
  %v33 = vunpack.c.l.b16 %v25
  %v34 = vpack.c.b16 %v33, %v32
  %v39 = vunpack.c.l.b16 %v26
  %v40 = vunpack.c.l.b16 %v27
  %v41 = vunpack.c.l.b16 %v28
  %v42 = vunpack.c.l.b16 %v29
  %v43 = vpack.c.b16 %v40, %v39
  %v44 = vpack.c.b16 %v42, %v41
  %vm47 = vcmask 261120
  %v49 = vsel %vm47, %v34, 0
  %51 = vmatprep.subr.bf16.mxu0 0
  %52 = vmatpush1.bf16.msra.mxu0 0
  %53 = vmatprep.subr.bf16.mxu0 0
  %54 = vmatpush1.bf16.msra.mxu0 0
  %55 = vmatprep.subr.bf16.mxu0 0
  %56 = vmatpush1.bf16.msra.mxu0 0
  %57 = vmatprep.subr.bf16.mxu0 0
  %58 = vmatpush1.bf16.msra.mxu0 0
  %59 = vmatprep.subr.bf16.mxu0 0
  %60 = vmatpush1.bf16.msra.mxu0 0
  %61 = vmatprep.subr.bf16.mxu0 0
  %62 = vmatpush1.bf16.msra.mxu0 0
  %63 = vmatprep.subr.bf16.mxu0 0
  %64 = vmatpush1.bf16.msra.mxu0 %v44
  %65 = vmatprep.subr.bf16.mxu0 0
  %66 = vmatpush1.bf16.msra.mxu0 %v43
  %67 = vmatprep.subr.bf16.mxu0 0
  %68 = vmatpush2.bf16.msra.mxu0 0
  %69 = vmatprep.subr.bf16.mxu0 0
  %70 = vmatpush2.bf16.msra.mxu0 0
  %71 = vmatprep.subr.bf16.mxu0 0
  %72 = vmatpush2.bf16.msra.mxu0 0
  %73 = vmatprep.subr.bf16.mxu0 0
  %74 = vmatpush2.bf16.msra.mxu0 0
  %75 = vmatprep.subr.bf16.mxu0 0
  %76 = vmatpush2.bf16.msra.mxu0 0
  %77 = vmatprep.subr.bf16.mxu0 0
  %78 = vmatpush2.bf16.msra.mxu0 0
  %79 = vmatprep.subr.bf16.mxu0 0
  %80 = vmatpush2.bf16.msra.mxu0 0
  %81 = vmatprep.subr.bf16.mxu0 0
  %82 = vmatpush2.bf16.msra.mxu0 0
  %83 = vmatprep.mubr.bf16.mxu0 0
  %84 = vmatmul.mubr.bf16.gmra.mxu0 %v49
  %v85 = vpop.f32.mrf.mxu0
  %v86 = vadd.f32 0.0, %v85
  %v87 = vpop.f32.mrf.mxu0
  %v88 = vpop.f32.mrf.mxu0
  %v89 = vadd.f32 0.0, %v88
  %v90 = vpop.f32.mrf.mxu0
  %91 = vdwg.mxu0
  %v92 = vadd.f32 %v22, %v86
  %v93 = vadd.f32 %v23, %v89
  %vm94 = vcmask 523264
  %95 = vst.msk [vmem:[#allocation2] sm:$0xff] %vm94, %v92
  %96 = vst.msk [vmem:[#allocation2 + $0x8] sm:$0xff] %vm94, %v93
  // Predicated region
  $region18: #{decoder_layer.10} parent=0 // pred_check
    %p97 = pneg %p15
  $region19: #{decoder_layer.10} parent=0 // pred_check_branch
    %99 = sbr.rel (%p97) target = $region21
  $region20: #{decoder_layer.10} parent=0 // pred_region
    %v100 = vld [vmem:[#allocation2] sm:$0xff]
    %v101 = vld [vmem:[#allocation2 + $0x8] sm:$0xff]
    %v102 = vld [vmem:[%s2] sm:$0x1]
    %v104 = vlaneseq
    %v105 = vshrl.u32 %v104, 7
    %v106 = vsub.s32 0, %v105
    %v107 = vrot.slane %v102, %v106
    %v109 = vadd.f32 %v100, %v107
    %v110 = vadd.f32 %v101, %v107
    %v111 = vpack.c.bf16 %v110, %v109
    %v113 = vunpack.c.l.b16 %v111
    %v114 = vunpack.c.h.b16 %v111
    %v115 = vpack.c.b16 %v113, %v113
    %v116 = vpack.c.b16 %v114, %v114
    %vm119 = vcmask 519168
    %120 = vst.msk [vmem:[%s3] sm:$0xf] %vm119, %v115
    %121 = vst.msk [vmem:[%s3 + $0x4] sm:$0xf] %vm119, %v116
  $region21: #{decoder_layer.10} parent=0 // pred_fallthru
    _
  // Predicated region
  $region22: #{decoder_layer.10} parent=0 // pred_check
    _
  $region23: #{decoder_layer.10} parent=0 // pred_check_branch
    %123 = sbr.rel (0) target = $region25
  $region24: #{decoder_layer.10} parent=0 // pred_region
    _
  $region25: #{decoder_layer.10} parent=0 // pred_fallthru
    _
  // Predicated region
  $region26: #{decoder_layer.10} parent=0 // pred_check
    _
  $region27: #{decoder_layer.10} parent=0 // pred_check_branch
    %125 = sbr.rel (0) target = $region29
  $region28: #{decoder_layer.10} parent=0 // pred_region
    _
  $region29: #{decoder_layer.10} parent=0 // pred_fallthru
    _

// kernel: decoder_layer.9
$region0: #{decoder_layer.9}
  #allocation0 [shape = 'u32[]', space=smem, size = 0x4, offset = 0x4, fixed_abs, tag = 'smem constant byte address 0x4 - core index']
  #allocation1 [shape = 'u32[144,128]{1,0:T(1,128)}', space=vmem, size = 0x12000, scoped, tag = 'internal scratch']
  #allocation2 [shape = 'f32[16,32]{1,0:T(8,128)}', space=vmem, size = 0x2000, scoped, tag = 'scratch operand']
  %s0 = inlined_call_operand.vmem [shape: bf16[16,32], index: 0, kind: input, shape index: {}]
  %s1 = inlined_call_operand.vmem [shape: bf16[32,32], index: 1, kind: input, shape index: {}]
  %s2 = inlined_call_operand.vmem [shape: f32[1,32], index: 2, kind: input, shape index: {}]
  %s3 = inlined_call_operand.vmem [shape: bf16[16,32], index: 3, kind: output, shape index: {}]
  %s4 = sld [smem:[#allocation0]]
  $region30: #{decoder_layer.9} parent=0
    _
  %s6 = ssub.s32 1, %s4
  %s7 = scalar_select 0, %s6, %s4
  // Predicated region
  $region2: #{decoder_layer.9} parent=0 // pred_check
    _
  $region3: #{decoder_layer.9} parent=0 // pred_check_branch
    %9 = sbr.rel (0) target = $region5
  $region4: #{decoder_layer.9} parent=0 // pred_region
    _
  $region5: #{decoder_layer.9} parent=0 // pred_fallthru
    _
  // Predicated region
  $region6: #{decoder_layer.9} parent=0 // pred_check
    _
  $region7: #{decoder_layer.9} parent=0 // pred_check_branch
    %11 = sbr.rel (0) target = $region9
  $region8: #{decoder_layer.9} parent=0 // pred_region
    _
  $region9: #{decoder_layer.9} parent=0 // pred_fallthru
    _
  // Predicated region
  $region10: #{decoder_layer.9} parent=0 // pred_check
    _
  $region11: #{decoder_layer.9} parent=0 // pred_check_branch
    %13 = sbr.rel (0) target = $region13
  $region12: #{decoder_layer.9} parent=0 // pred_region
    _
  $region13: #{decoder_layer.9} parent=0 // pred_fallthru
    _
  %p15 = scmp.eq.s32.totalorder 0, 0
  // Predicated region
  $region14: #{decoder_layer.9} parent=0 // pred_check
    %p16 = pneg %p15
  $region15: #{decoder_layer.9} parent=0 // pred_check_branch
    %18 = sbr.rel (%p16) target = $region17
  $region16: #{decoder_layer.9} parent=0 // pred_region
    %vm19 = vcmask 261120
    %20 = vst.msk [vmem:[#allocation2] sm:$0xff] %vm19, 0.0
    %21 = vst.msk [vmem:[#allocation2 + $0x8] sm:$0xff] %vm19, 0.0
  $region17: #{decoder_layer.9} parent=0 // pred_fallthru
    _
  %v22 = vld [vmem:[#allocation2] sm:$0xff]
  %v23 = vld [vmem:[#allocation2 + $0x8] sm:$0xff]
  %v24 = vld [vmem:[%s0] sm:$0xf]
  %v25 = vld [vmem:[%s0 + $0x4] sm:$0xf]
  %v26 = vld [vmem:[%s1] sm:$0xf]
  %v27 = vld [vmem:[%s1 + $0x4] sm:$0xf]
  %v28 = vld [vmem:[%s1 + $0x8] sm:$0xf]
  %v29 = vld [vmem:[%s1 + $0xc] sm:$0xf]
  %v32 = vunpack.c.l.b16 %v24
  %v33 = vunpack.c.l.b16 %v25
  %v34 = vpack.c.b16 %v33, %v32
  %v39 = vunpack.c.l.b16 %v26
  %v40 = vunpack.c.l.b16 %v27
  %v41 = vunpack.c.l.b16 %v28
  %v42 = vunpack.c.l.b16 %v29
  %v43 = vpack.c.b16 %v40, %v39
  %v44 = vpack.c.b16 %v42, %v41
  %vm47 = vcmask 261120
  %v49 = vsel %vm47, %v34, 0
  %51 = vmatprep.subr.bf16.mxu0 0
  %52 = vmatpush1.bf16.msra.mxu0 0
  %53 = vmatprep.subr.bf16.mxu0 0
  %54 = vmatpush1.bf16.msra.mxu0 0
  %55 = vmatprep.subr.bf16.mxu0 0
  %56 = vmatpush1.bf16.msra.mxu0 0
  %57 = vmatprep.subr.bf16.mxu0 0
  %58 = vmatpush1.bf16.msra.mxu0 0
  %59 = vmatprep.subr.bf16.mxu0 0
  %60 = vmatpush1.bf16.msra.mxu0 0
  %61 = vmatprep.subr.bf16.mxu0 0
  %62 = vmatpush1.bf16.msra.mxu0 0
  %63 = vmatprep.subr.bf16.mxu0 0
  %64 = vmatpush1.bf16.msra.mxu0 %v44
  %65 = vmatprep.subr.bf16.mxu0 0
  %66 = vmatpush1.bf16.msra.mxu0 %v43
  %67 = vmatprep.subr.bf16.mxu0 0
  %68 = vmatpush2.bf16.msra.mxu0 0
  %69 = vmatprep.subr.bf16.mxu0 0
  %70 = vmatpush2.bf16.msra.mxu0 0
  %71 = vmatprep.subr.bf16.mxu0 0
  %72 = vmatpush2.bf16.msra.mxu0 0
  %73 = vmatprep.subr.bf16.mxu0 0
  %74 = vmatpush2.bf16.msra.mxu0 0
  %75 = vmatprep.subr.bf16.mxu0 0
  %76 = vmatpush2.bf16.msra.mxu0 0
  %77 = vmatprep.subr.bf16.mxu0 0
  %78 = vmatpush2.bf16.msra.mxu0 0
  %79 = vmatprep.subr.bf16.mxu0 0
  %80 = vmatpush2.bf16.msra.mxu0 0
  %81 = vmatprep.subr.bf16.mxu0 0
  %82 = vmatpush2.bf16.msra.mxu0 0
  %83 = vmatprep.mubr.bf16.mxu0 0
  %84 = vmatmul.mubr.bf16.gmra.mxu0 %v49
  %v85 = vpop.f32.mrf.mxu0
  %v86 = vadd.f32 0.0, %v85
  %v87 = vpop.f32.mrf.mxu0
  %v88 = vpop.f32.mrf.mxu0
  %v89 = vadd.f32 0.0, %v88
  %v90 = vpop.f32.mrf.mxu0
  %91 = vdwg.mxu0
  %v92 = vadd.f32 %v22, %v86
  %v93 = vadd.f32 %v23, %v89
  %94 = vst.msk [vmem:[#allocation2] sm:$0xff] %vm47, %v92
  %95 = vst.msk [vmem:[#allocation2 + $0x8] sm:$0xff] %vm47, %v93
  // Predicated region
  $region18: #{decoder_layer.9} parent=0 // pred_check
    %p96 = pneg %p15
  $region19: #{decoder_layer.9} parent=0 // pred_check_branch
    %98 = sbr.rel (%p96) target = $region21
  $region20: #{decoder_layer.9} parent=0 // pred_region
    %v99 = vld [vmem:[#allocation2] sm:$0xff]
    %v100 = vld [vmem:[#allocation2 + $0x8] sm:$0xff]
    %v101 = vld [vmem:[%s2] sm:$0x1]
    %v103 = vlaneseq
    %v104 = vshrl.u32 %v103, 7
    %v105 = vsub.s32 0, %v104
    %v106 = vrot.slane %v101, %v105
    %v108 = vadd.f32 %v99, %v106
    %v109 = vadd.f32 %v100, %v106
    %v110 = vpack.c.bf16 %v109, %v108
    %v112 = vunpack.c.l.b16 %v110
    %v113 = vunpack.c.h.b16 %v110
    %v114 = vpack.c.b16 %v112, %v112
    %v115 = vpack.c.b16 %v113, %v113
    %vm118 = vcmask 257024
    %119 = vst.msk [vmem:[%s3] sm:$0xf] %vm118, %v114
    %120 = vst.msk [vmem:[%s3 + $0x4] sm:$0xf] %vm118, %v115
  $region21: #{decoder_layer.9} parent=0 // pred_fallthru
    _
  // Predicated region
  $region22: #{decoder_layer.9} parent=0 // pred_check
    _
  $region23: #{decoder_layer.9} parent=0 // pred_check_branch
    %122 = sbr.rel (0) target = $region25
  $region24: #{decoder_layer.9} parent=0 // pred_region
    _
  $region25: #{decoder_layer.9} parent=0 // pred_fallthru
    _
  // Predicated region
  $region26: #{decoder_layer.9} parent=0 // pred_check
    _
  $region27: #{decoder_layer.9} parent=0 // pred_check_branch
    %124 = sbr.rel (0) target = $region29
  $region28: #{decoder_layer.9} parent=0 // pred_region
    _
  $region29: #{decoder_layer.9} parent=0 // pred_fallthru
    _

// kernel: decoder_layer.12
$region0: #{decoder_layer.12}
  #allocation0 [shape = 'u32[]', space=smem, size = 0x4, offset = 0x4, fixed_abs, tag = 'smem constant byte address 0x4 - core index']
  #allocation1 [shape = 'u32[144,128]{1,0:T(1,128)}', space=vmem, size = 0x12000, scoped, tag = 'internal scratch']
  #allocation2 [shape = 'f32[16,32]{1,0:T(8,128)}', space=vmem, size = 0x2000, scoped, tag = 'scratch operand']
  %s0 = inlined_call_operand.vmem [shape: bf16[16,32], index: 0, kind: input, shape index: {}]
  %s1 = inlined_call_operand.vmem [shape: bf16[32,32], index: 1, kind: input, shape index: {}]
  %s2 = inlined_call_operand.vmem [shape: f32[1,32], index: 2, kind: input, shape index: {}]
  %s3 = inlined_call_operand.vmem [shape: bf16[16,32], index: 3, kind: input, shape index: {}]
  %s4 = inlined_call_operand.vmem [shape: f32[1,32], index: 4, kind: input, shape index: {}]
  %s5 = inlined_call_operand.vmem [shape: f32[1,32], index: 5, kind: input, shape index: {}]
  %s6 = inlined_call_operand.vmem [shape: bf16[16,32], index: 6, kind: output, shape index: {}]
  %s7 = sld [smem:[#allocation0]]
  $region42: #{decoder_layer.12} parent=0
    _
  %s9 = ssub.s32 1, %s7
  %s10 = scalar_select 0, %s9, %s7
  // Predicated region
  $region2: #{decoder_layer.12} parent=0 // pred_check
    _
  $region3: #{decoder_layer.12} parent=0 // pred_check_branch
    %12 = sbr.rel (0) target = $region5
  $region4: #{decoder_layer.12} parent=0 // pred_region
    _
  $region5: #{decoder_layer.12} parent=0 // pred_fallthru
    _
  // Predicated region
  $region6: #{decoder_layer.12} parent=0 // pred_check
    _
  $region7: #{decoder_layer.12} parent=0 // pred_check_branch
    %14 = sbr.rel (0) target = $region9
  $region8: #{decoder_layer.12} parent=0 // pred_region
    _
  $region9: #{decoder_layer.12} parent=0 // pred_fallthru
    _
  // Predicated region
  $region10: #{decoder_layer.12} parent=0 // pred_check
    _
  $region11: #{decoder_layer.12} parent=0 // pred_check_branch
    %16 = sbr.rel (0) target = $region13
  $region12: #{decoder_layer.12} parent=0 // pred_region
    _
  $region13: #{decoder_layer.12} parent=0 // pred_fallthru
    _
  // Predicated region
  $region14: #{decoder_layer.12} parent=0 // pred_check
    _
  $region15: #{decoder_layer.12} parent=0 // pred_check_branch
    %18 = sbr.rel (0) target = $region17
  $region16: #{decoder_layer.12} parent=0 // pred_region
    _
  $region17: #{decoder_layer.12} parent=0 // pred_fallthru
    _
  // Predicated region
  $region18: #{decoder_layer.12} parent=0 // pred_check
    _
  $region19: #{decoder_layer.12} parent=0 // pred_check_branch
    %20 = sbr.rel (0) target = $region21
  $region20: #{decoder_layer.12} parent=0 // pred_region
    _
  $region21: #{decoder_layer.12} parent=0 // pred_fallthru
    _
  // Predicated region
  $region22: #{decoder_layer.12} parent=0 // pred_check
    _
  $region23: #{decoder_layer.12} parent=0 // pred_check_branch
    %22 = sbr.rel (0) target = $region25
  $region24: #{decoder_layer.12} parent=0 // pred_region
    _
  $region25: #{decoder_layer.12} parent=0 // pred_fallthru
    _
  %p24 = scmp.eq.s32.totalorder 0, 0
  // Predicated region
  $region26: #{decoder_layer.12} parent=0 // pred_check
    %p25 = pneg %p24
  $region27: #{decoder_layer.12} parent=0 // pred_check_branch
    %27 = sbr.rel (%p25) target = $region29
  $region28: #{decoder_layer.12} parent=0 // pred_region
    %vm28 = vcmask 261120
    %29 = vst.msk [vmem:[#allocation2] sm:$0xff] %vm28, 0.0
    %30 = vst.msk [vmem:[#allocation2 + $0x8] sm:$0xff] %vm28, 0.0
  $region29: #{decoder_layer.12} parent=0 // pred_fallthru
    _
  %v31 = vld [vmem:[#allocation2] sm:$0xff]
  %v32 = vld [vmem:[#allocation2 + $0x8] sm:$0xff]
  %v33 = vld [vmem:[%s0] sm:$0xf]
  %v34 = vld [vmem:[%s0 + $0x4] sm:$0xf]
  %v35 = vld [vmem:[%s1] sm:$0xf]
  %v36 = vld [vmem:[%s1 + $0x4] sm:$0xf]
  %v37 = vld [vmem:[%s1 + $0x8] sm:$0xf]
  %v38 = vld [vmem:[%s1 + $0xc] sm:$0xf]
  %v41 = vunpack.c.l.b16 %v33
  %v42 = vunpack.c.l.b16 %v34
  %v43 = vpack.c.b16 %v42, %v41
  %v48 = vunpack.c.l.b16 %v35
  %v49 = vunpack.c.l.b16 %v36
  %v50 = vunpack.c.l.b16 %v37
  %v51 = vunpack.c.l.b16 %v38
  %v52 = vpack.c.b16 %v49, %v48
  %v53 = vpack.c.b16 %v51, %v50
  %vm56 = vcmask 261120
  %v58 = vsel %vm56, %v43, 0
  %60 = vmatprep.subr.bf16.mxu0 0
  %61 = vmatpush1.bf16.msra.mxu0 0
  %62 = vmatprep.subr.bf16.mxu0 0
  %63 = vmatpush1.bf16.msra.mxu0 0
  %64 = vmatprep.subr.bf16.mxu0 0
  %65 = vmatpush1.bf16.msra.mxu0 0
  %66 = vmatprep.subr.bf16.mxu0 0
  %67 = vmatpush1.bf16.msra.mxu0 0
  %68 = vmatprep.subr.bf16.mxu0 0
  %69 = vmatpush1.bf16.msra.mxu0 0
  %70 = vmatprep.subr.bf16.mxu0 0
  %71 = vmatpush1.bf16.msra.mxu0 0
  %72 = vmatprep.subr.bf16.mxu0 0
  %73 = vmatpush1.bf16.msra.mxu0 %v53
  %74 = vmatprep.subr.bf16.mxu0 0
  %75 = vmatpush1.bf16.msra.mxu0 %v52
  %76 = vmatprep.subr.bf16.mxu0 0
  %77 = vmatpush2.bf16.msra.mxu0 0
  %78 = vmatprep.subr.bf16.mxu0 0
  %79 = vmatpush2.bf16.msra.mxu0 0
  %80 = vmatprep.subr.bf16.mxu0 0
  %81 = vmatpush2.bf16.msra.mxu0 0
  %82 = vmatprep.subr.bf16.mxu0 0
  %83 = vmatpush2.bf16.msra.mxu0 0
  %84 = vmatprep.subr.bf16.mxu0 0
  %85 = vmatpush2.bf16.msra.mxu0 0
  %86 = vmatprep.subr.bf16.mxu0 0
  %87 = vmatpush2.bf16.msra.mxu0 0
  %88 = vmatprep.subr.bf16.mxu0 0
  %89 = vmatpush2.bf16.msra.mxu0 0
  %90 = vmatprep.subr.bf16.mxu0 0
  %91 = vmatpush2.bf16.msra.mxu0 0
  %92 = vmatprep.mubr.bf16.mxu0 0
  %93 = vmatmul.mubr.bf16.gmra.mxu0 %v58
  %v94 = vpop.f32.mrf.mxu0
  %v95 = vadd.f32 0.0, %v94
  %v96 = vpop.f32.mrf.mxu0
  %v97 = vpop.f32.mrf.mxu0
  %v98 = vadd.f32 0.0, %v97
  %v99 = vpop.f32.mrf.mxu0
  %100 = vdwg.mxu0
  %v101 = vadd.f32 %v31, %v95
  %v102 = vadd.f32 %v32, %v98
  %103 = vst.msk [vmem:[#allocation2] sm:$0xff] %vm56, %v101
  %104 = vst.msk [vmem:[#allocation2 + $0x8] sm:$0xff] %vm56, %v102
  // Predicated region
  $region30: #{decoder_layer.12} parent=0 // pred_check
    %p105 = pneg %p24
  $region31: #{decoder_layer.12} parent=0 // pred_check_branch
    %107 = sbr.rel (%p105) target = $region33
  $region32: #{decoder_layer.12} parent=0 // pred_region
    %v108 = vld [vmem:[#allocation2] sm:$0xff]
    %v109 = vld [vmem:[#allocation2 + $0x8] sm:$0xff]
    %v110 = vld [vmem:[%s2] sm:$0x1]
    %v112 = vlaneseq
    %v113 = vshrl.u32 %v112, 7
    %v114 = vsub.s32 0, %v113
    %v115 = vrot.slane %v110, %v114
    %v117 = vadd.f32 %v108, %v115
    %v118 = vadd.f32 %v109, %v115
    %v119 = vld [vmem:[%s3] sm:$0xf]
    %v120 = vld [vmem:[%s3 + $0x4] sm:$0xf]
    %v121 = vunpack.c.l.bf16 %v119
    %v122 = vunpack.c.l.bf16 %v120
    %v123 = vadd.f32 %v117, %v121
    %v124 = vadd.f32 %v118, %v122
    %v125 = vsel %vm56, %v123, 0.0
    %126 = vadd.xlane.f32.xlu0 %v125
    %v127 = vpop.xlane.xlu0 %126
    %v128 = vsel %vm56, %v124, 0.0
    %129 = vadd.xlane.f32.xlu0 %v128
    %v130 = vpop.xlane.xlu0 %129
    %v131 = vrcp.pop 32.0
    %v132 = vmul.f32 %v127, %v131
    %v133 = vmul.f32 %v130, %v131
    %v134 = vsub.f32 %v123, %v132
    %v135 = vsub.f32 %v124, %v133
    %v136 = vmul.f32 %v134, %v134
    %v137 = vmul.f32 %v135, %v135
    %v138 = vsel %vm56, %v136, 0.0
    %139 = vadd.xlane.f32.xlu0 %v138
    %v140 = vpop.xlane.xlu0 %139
    %v141 = vsel %vm56, %v137, 0.0
    %142 = vadd.xlane.f32.xlu0 %v141
    %v143 = vpop.xlane.xlu0 %142
    %v144 = vmul.f32 %v140, %v131
    %v145 = vmul.f32 %v143, %v131
    %v146 = vadd.f32 %v144, 1e-05
    %v147 = vadd.f32 %v145, 1e-05
    %v148 = vrsqrt.pop %v146
    %v149 = vrsqrt.pop %v147
    %v150 = vmul.f32 %v134, %v148
    %v151 = vmul.f32 %v135, %v149
    %v152 = vld [vmem:[%s4] sm:$0x1]
    %v154 = vlaneseq
    %v155 = vshrl.u32 %v154, 7
    %v156 = vsub.s32 0, %v155
    %v157 = vrot.slane %v152, %v156
    %v159 = vmul.f32 %v150, %v157
    %v160 = vmul.f32 %v151, %v157
    %v161 = vld [vmem:[%s5] sm:$0x1]
    %v163 = vlaneseq
    %v164 = vshrl.u32 %v163, 7
    %v165 = vsub.s32 0, %v164
    %v166 = vrot.slane %v161, %v165
    %v168 = vadd.f32 %v159, %v166
    %v169 = vadd.f32 %v160, %v166
    %v170 = vpack.c.bf16 %v169, %v168
    %v172 = vunpack.c.l.b16 %v170
    %v173 = vunpack.c.h.b16 %v170
    %v174 = vpack.c.b16 %v172, %v172
    %v175 = vpack.c.b16 %v173, %v173
    %vm178 = vcmask 257024
    %179 = vst.msk [vmem:[%s6] sm:$0xf] %vm178, %v174
    %180 = vst.msk [vmem:[%s6 + $0x4] sm:$0xf] %vm178, %v175
  $region33: #{decoder_layer.12} parent=0 // pred_fallthru
    _
  // Predicated region
  $region34: #{decoder_layer.12} parent=0 // pred_check
    _
  $region35: #{decoder_layer.12} parent=0 // pred_check_branch
    %182 = sbr.rel (0) target = $region37
  $region36: #{decoder_layer.12} parent=0 // pred_region
    _
  $region37: #{decoder_layer.12} parent=0 // pred_fallthru
    _
  // Predicated region
  $region38: #{decoder_layer.12} parent=0 // pred_check
    _
  $region39: #{decoder_layer.12} parent=0 // pred_check_branch
    %184 = sbr.rel (0) target = $region41
  $region40: #{decoder_layer.12} parent=0 // pred_region
    _
  $region41: #{decoder_layer.12} parent=0 // pred_fallthru
    _

// kernel: decoder_layer.17
$region0: #{decoder_layer.17}
  #allocation0 [shape = 'u32[]', space=smem, size = 0x4, offset = 0x4, fixed_abs, tag = 'smem constant byte address 0x4 - core index']
  #allocation1 [shape = 'u32[144,128]{1,0:T(1,128)}', space=vmem, size = 0x12000, scoped, tag = 'internal scratch']
  %s0 = inlined_call_operand.vmem [shape: bf16[16,32], index: 0, kind: input, shape index: {}]
  %s1 = inlined_call_operand.vmem [shape: bf16[32,128], index: 1, kind: input, shape index: {}]
  %s2 = inlined_call_operand.vmem [shape: f32[1,128], index: 2, kind: input, shape index: {}]
  %s3 = inlined_call_operand.vmem [shape: bf16[128,32], index: 3, kind: input, shape index: {}]
  %s4 = inlined_call_operand.vmem [shape: f32[1,32], index: 4, kind: input, shape index: {}]
  %s5 = inlined_call_operand.vmem [shape: f32[1,32], index: 5, kind: input, shape index: {}]
  %s6 = inlined_call_operand.vmem [shape: f32[1,32], index: 6, kind: input, shape index: {}]
  %s7 = inlined_call_operand.hbm [shape: bf16[16,32], index: 7, kind: output, shape index: {}]
  %s8 = sld [smem:[#allocation0]]
  $region38: #{decoder_layer.17} parent=0
    _
  %s10 = ssub.s32 1, %s8
  %s11 = scalar_select 0, %s10, %s8
  $region1: #{decoder_layer.17} parent=0
    #allocation2 [shape = 'u8[4096]{0}', space=vmem, size = 0x1000, scoped, tag = 'output window, operand 0, single buffered']
    #allocation3 [shape = 's32[1]{0}', space=sflag, size = 0x4, scoped, tag = 'scoped memory for decoder_layer.17']
    %12 = vsyncpa [#allocation3], 0
    // Predicated region
    $region2: #{decoder_layer.17} parent=1 // pred_check
      _
    $region3: #{decoder_layer.17} parent=1 // pred_check_branch
      %14 = sbr.rel (0) target = $region5
    $region4: #{decoder_layer.17} parent=1 // pred_region
      _
    $region5: #{decoder_layer.17} parent=1 // pred_fallthru
      _
    // Predicated region
    $region6: #{decoder_layer.17} parent=1 // pred_check
      _
    $region7: #{decoder_layer.17} parent=1 // pred_check_branch
      %16 = sbr.rel (0) target = $region9
    $region8: #{decoder_layer.17} parent=1 // pred_region
      _
    $region9: #{decoder_layer.17} parent=1 // pred_fallthru
      _
    // Predicated region
    $region10: #{decoder_layer.17} parent=1 // pred_check
      _
    $region11: #{decoder_layer.17} parent=1 // pred_check_branch
      %18 = sbr.rel (0) target = $region13
    $region12: #{decoder_layer.17} parent=1 // pred_region
      _
    $region13: #{decoder_layer.17} parent=1 // pred_fallthru
      _
    // Predicated region
    $region14: #{decoder_layer.17} parent=1 // pred_check
      _
    $region15: #{decoder_layer.17} parent=1 // pred_check_branch
      %20 = sbr.rel (0) target = $region17
    $region16: #{decoder_layer.17} parent=1 // pred_region
      _
    $region17: #{decoder_layer.17} parent=1 // pred_fallthru
      _
    // Predicated region
    $region18: #{decoder_layer.17} parent=1 // pred_check
      _
    $region19: #{decoder_layer.17} parent=1 // pred_check_branch
      %22 = sbr.rel (0) target = $region21
    $region20: #{decoder_layer.17} parent=1 // pred_region
      _
    $region21: #{decoder_layer.17} parent=1 // pred_fallthru
      _
    // Predicated region
    $region22: #{decoder_layer.17} parent=1 // pred_check
      _
    $region23: #{decoder_layer.17} parent=1 // pred_check_branch
      %24 = sbr.rel (0) target = $region25
    $region24: #{decoder_layer.17} parent=1 // pred_region
      _
    $region25: #{decoder_layer.17} parent=1 // pred_fallthru
      _
    // Predicated region
    $region26: #{decoder_layer.17} parent=1 // pred_check
      _
    $region27: #{decoder_layer.17} parent=1 // pred_check_branch
      %26 = sbr.rel (0) target = $region29
    $region28: #{decoder_layer.17} parent=1 // pred_region
      _
    $region29: #{decoder_layer.17} parent=1 // pred_fallthru
      _
    %v28 = vld [vmem:[%s0] sm:$0xf]
    %v29 = vld [vmem:[%s0 + $0x4] sm:$0xf]
    %v30 = vld [vmem:[%s1] sm:$0xf]
    %v31 = vld [vmem:[%s1 + $0x4] sm:$0xf]
    %v32 = vld [vmem:[%s1 + $0x8] sm:$0xf]
    %v33 = vld [vmem:[%s1 + $0xc] sm:$0xf]
    %v34 = vld [vmem:[%s2] sm:$0x1]
    %v36 = vlaneseq
    %v37 = vshrl.u32 %v36, 7
    %v38 = vsub.s32 0, %v37
    %v39 = vrot.slane %v34, %v38
    %v43 = vunpack.c.l.b16 %v28
    %v44 = vunpack.c.l.b16 %v29
    %v45 = vpack.c.b16 %v44, %v43
    %v50 = vunpack.c.l.b16 %v30
    %v51 = vunpack.c.l.b16 %v31
    %v52 = vunpack.c.l.b16 %v32
    %v53 = vunpack.c.l.b16 %v33
    %v54 = vpack.c.b16 %v51, %v50
    %v55 = vpack.c.b16 %v53, %v52
    %vm58 = vcmask 261120
    %v60 = vsel %vm58, %v45, 0
    %62 = vmatprep.subr.bf16.mxu0 0
    %63 = vmatpush1.bf16.msra.mxu0 0
    %64 = vmatprep.subr.bf16.mxu0 0
    %65 = vmatpush1.bf16.msra.mxu0 0
    %66 = vmatprep.subr.bf16.mxu0 0
    %67 = vmatpush1.bf16.msra.mxu0 0
    %68 = vmatprep.subr.bf16.mxu0 0
    %69 = vmatpush1.bf16.msra.mxu0 0
    %70 = vmatprep.subr.bf16.mxu0 0
    %71 = vmatpush1.bf16.msra.mxu0 0
    %72 = vmatprep.subr.bf16.mxu0 0
    %73 = vmatpush1.bf16.msra.mxu0 0
    %74 = vmatprep.subr.bf16.mxu0 0
    %75 = vmatpush1.bf16.msra.mxu0 %v55
    %76 = vmatprep.subr.bf16.mxu0 0
    %77 = vmatpush1.bf16.msra.mxu0 %v54
    %78 = vmatprep.subr.bf16.mxu0 0
    %79 = vmatpush2.bf16.msra.mxu0 0
    %80 = vmatprep.subr.bf16.mxu0 0
    %81 = vmatpush2.bf16.msra.mxu0 0
    %82 = vmatprep.subr.bf16.mxu0 0
    %83 = vmatpush2.bf16.msra.mxu0 0
    %84 = vmatprep.subr.bf16.mxu0 0
    %85 = vmatpush2.bf16.msra.mxu0 0
    %86 = vmatprep.subr.bf16.mxu0 0
    %87 = vmatpush2.bf16.msra.mxu0 0
    %88 = vmatprep.subr.bf16.mxu0 0
    %89 = vmatpush2.bf16.msra.mxu0 0
    %90 = vmatprep.subr.bf16.mxu0 0
    %91 = vmatpush2.bf16.msra.mxu0 0
    %92 = vmatprep.subr.bf16.mxu0 0
    %93 = vmatpush2.bf16.msra.mxu0 0
    %94 = vmatprep.mubr.bf16.mxu0 0
    %95 = vmatmul.mubr.bf16.gmra.mxu0 %v60
    %v96 = vpop.f32.mrf.mxu0
    %v97 = vadd.f32 %v39, %v96
    %v98 = vpop.f32.mrf.mxu0
    %v99 = vpop.f32.mrf.mxu0
    %v100 = vadd.f32 %v39, %v99
    %v101 = vpop.f32.mrf.mxu0
    %102 = vdwg.mxu0
    %v103 = vmax.f32 %v97, 0.0
    %v104 = vmax.f32 %v100, 0.0
    %v105 = vpack.c.bf16 %v104, %v103
    %v106 = vld [vmem:[%s3] sm:$0xf]
    %v107 = vld [vmem:[%s3 + $0x4] sm:$0xf]
    %v108 = vld [vmem:[%s3 + $0x8] sm:$0xf]
    %v109 = vld [vmem:[%s3 + $0xc] sm:$0xf]
    %v110 = vld [vmem:[%s3 + $0x10] sm:$0xf]
    %v111 = vld [vmem:[%s3 + $0x14] sm:$0xf]
    %v112 = vld [vmem:[%s3 + $0x18] sm:$0xf]
    %v113 = vld [vmem:[%s3 + $0x1c] sm:$0xf]
    %v114 = vld [vmem:[%s3 + $0x20] sm:$0xf]
    %v115 = vld [vmem:[%s3 + $0x24] sm:$0xf]
    %v116 = vld [vmem:[%s3 + $0x28] sm:$0xf]
    %v117 = vld [vmem:[%s3 + $0x2c] sm:$0xf]
    %v118 = vld [vmem:[%s3 + $0x30] sm:$0xf]
    %v119 = vld [vmem:[%s3 + $0x34] sm:$0xf]
    %v120 = vld [vmem:[%s3 + $0x38] sm:$0xf]
    %v121 = vld [vmem:[%s3 + $0x3c] sm:$0xf]
    %v122 = vld [vmem:[%s4] sm:$0x1]
    %v124 = vlaneseq
    %v125 = vshrl.u32 %v124, 7
    %v126 = vsub.s32 0, %v125
    %v127 = vrot.slane %v122, %v126
    %v145 = vunpack.c.l.b16 %v106
    %v146 = vunpack.c.l.b16 %v107
    %v147 = vunpack.c.l.b16 %v108
    %v148 = vunpack.c.l.b16 %v109
    %v149 = vunpack.c.l.b16 %v110
    %v150 = vunpack.c.l.b16 %v111
    %v151 = vunpack.c.l.b16 %v112
    %v152 = vunpack.c.l.b16 %v113
    %v153 = vunpack.c.l.b16 %v114
    %v154 = vunpack.c.l.b16 %v115
    %v155 = vunpack.c.l.b16 %v116
    %v156 = vunpack.c.l.b16 %v117
    %v157 = vunpack.c.l.b16 %v118
    %v158 = vunpack.c.l.b16 %v119
    %v159 = vunpack.c.l.b16 %v120
    %v160 = vunpack.c.l.b16 %v121
    %v161 = vpack.c.b16 %v146, %v145
    %v162 = vpack.c.b16 %v148, %v147
    %v163 = vpack.c.b16 %v150, %v149
    %v164 = vpack.c.b16 %v152, %v151
    %v165 = vpack.c.b16 %v154, %v153
    %v166 = vpack.c.b16 %v156, %v155
    %v167 = vpack.c.b16 %v158, %v157
    %v168 = vpack.c.b16 %v160, %v159
    %177 = vmatprep.subr.bf16.mxu0 0
    %178 = vmatpush1.bf16.msra.mxu0 %v168
    %179 = vmatprep.subr.bf16.mxu0 0
    %180 = vmatpush1.bf16.msra.mxu0 %v167
    %181 = vmatprep.subr.bf16.mxu0 0
    %182 = vmatpush1.bf16.msra.mxu0 %v166
    %183 = vmatprep.subr.bf16.mxu0 0
    %184 = vmatpush1.bf16.msra.mxu0 %v165
    %185 = vmatprep.subr.bf16.mxu0 0
    %186 = vmatpush1.bf16.msra.mxu0 %v164
    %187 = vmatprep.subr.bf16.mxu0 0
    %188 = vmatpush1.bf16.msra.mxu0 %v163
    %189 = vmatprep.subr.bf16.mxu0 0
    %190 = vmatpush1.bf16.msra.mxu0 %v162
    %191 = vmatprep.subr.bf16.mxu0 0
    %192 = vmatpush1.bf16.msra.mxu0 %v161
    %193 = vmatprep.subr.bf16.mxu0 0
    %194 = vmatpush2.bf16.msra.mxu0 0
    %195 = vmatprep.subr.bf16.mxu0 0
    %196 = vmatpush2.bf16.msra.mxu0 0
    %197 = vmatprep.subr.bf16.mxu0 0
    %198 = vmatpush2.bf16.msra.mxu0 0
    %199 = vmatprep.subr.bf16.mxu0 0
    %200 = vmatpush2.bf16.msra.mxu0 0
    %201 = vmatprep.subr.bf16.mxu0 0
    %202 = vmatpush2.bf16.msra.mxu0 0
    %203 = vmatprep.subr.bf16.mxu0 0
    %204 = vmatpush2.bf16.msra.mxu0 0
    %205 = vmatprep.subr.bf16.mxu0 0
    %206 = vmatpush2.bf16.msra.mxu0 0
    %207 = vmatprep.subr.bf16.mxu0 0
    %208 = vmatpush2.bf16.msra.mxu0 0
    %209 = vmatprep.mubr.bf16.mxu0 0
    %210 = vmatmul.mubr.bf16.gmra.mxu0 %v105
    %v211 = vpop.f32.mrf.mxu0
    %v212 = vadd.f32 %v127, %v211
    %v213 = vpop.f32.mrf.mxu0
    %v214 = vpop.f32.mrf.mxu0
    %v215 = vadd.f32 %v127, %v214
    %v216 = vpop.f32.mrf.mxu0
    %217 = vdwg.mxu0
    %v218 = vunpack.c.l.bf16 %v28
    %v219 = vunpack.c.l.bf16 %v29
    %v220 = vadd.f32 %v212, %v218
    %v221 = vadd.f32 %v215, %v219
    %v222 = vsel %vm58, %v220, 0.0
    %223 = vadd.xlane.f32.xlu0 %v222
    %v224 = vpop.xlane.xlu0 %223
    %v225 = vsel %vm58, %v221, 0.0
    %226 = vadd.xlane.f32.xlu0 %v225
    %v227 = vpop.xlane.xlu0 %226
    %v228 = vrcp.pop 32.0
    %v229 = vmul.f32 %v224, %v228
    %v230 = vmul.f32 %v227, %v228
    %v231 = vsub.f32 %v220, %v229
    %v232 = vsub.f32 %v221, %v230
    %v233 = vmul.f32 %v231, %v231
    %v234 = vmul.f32 %v232, %v232
    %v235 = vsel %vm58, %v233, 0.0
    %236 = vadd.xlane.f32.xlu0 %v235
    %v237 = vpop.xlane.xlu0 %236
    %v238 = vsel %vm58, %v234, 0.0
    %239 = vadd.xlane.f32.xlu0 %v238
    %v240 = vpop.xlane.xlu0 %239
    %v241 = vmul.f32 %v237, %v228
    %v242 = vmul.f32 %v240, %v228
    %v243 = vadd.f32 %v241, 1e-05
    %v244 = vadd.f32 %v242, 1e-05
    %v245 = vrsqrt.pop %v243
    %v246 = vrsqrt.pop %v244
    %v247 = vmul.f32 %v231, %v245
    %v248 = vmul.f32 %v232, %v246
    %v249 = vld [vmem:[%s5] sm:$0x1]
    %v251 = vlaneseq
    %v252 = vshrl.u32 %v251, 7
    %v253 = vsub.s32 0, %v252
    %v254 = vrot.slane %v249, %v253
    %v256 = vmul.f32 %v247, %v254
    %v257 = vmul.f32 %v248, %v254
    %v258 = vld [vmem:[%s6] sm:$0x1]
    %v260 = vlaneseq
    %v261 = vshrl.u32 %v260, 7
    %v262 = vsub.s32 0, %v261
    %v263 = vrot.slane %v258, %v262
    %v265 = vadd.f32 %v256, %v263
    %v266 = vadd.f32 %v257, %v263
    %v267 = vpack.c.bf16 %v266, %v265
    %v269 = vunpack.c.l.b16 %v267
    %v270 = vunpack.c.h.b16 %v267
    %v271 = vpack.c.b16 %v269, %v269
    %v272 = vpack.c.b16 %v270, %v270
    %vm275 = vcmask 257024
    %276 = vst.msk [vmem:[#allocation2] sm:$0xf] %vm275, %v271
    %277 = vst.msk [vmem:[#allocation2 + $0x4] sm:$0xf] %vm275, %v272
    // Predicated region
    $region30: #{decoder_layer.17} parent=1 // pred_check
      _
    $region31: #{decoder_layer.17} parent=1 // pred_check_branch
      %279 = sbr.rel (0) target = $region33
    $region32: #{decoder_layer.17} parent=1 // pred_region
      %s281 = ssub.s32 128, 128
      %282 = vsyncadd [#allocation3], %s281
      %s283 = sshll.u32 [#allocation2], 4
      %s284 = int_to_ptr.vmem [resolvable:$true] %s283
      %289 = dma.vmem_to_hbm [thread:$0]  %s284, 128, %s7, [#allocation3], 64, 64, 4
    $region33: #{decoder_layer.17} parent=1 // pred_fallthru
      _
    // Predicated region
    $region34: #{decoder_layer.17} parent=1 // pred_check
      _
    $region35: #{decoder_layer.17} parent=1 // pred_check_branch
      %291 = sbr.rel (0) target = $region37
    $region36: #{decoder_layer.17} parent=1 // pred_region
      %292 = dma.done [#allocation3], 128
    $region37: #{decoder_layer.17} parent=1 // pred_fallthru
      _
    %293 = vsyncpa [#allocation3], 1

</llo_original>
